<compile_context>
chip_gen: v5e
topology: v5e:2x2
jax: 0.10.0
libtpu: 0.0.40
codegen_flags: <defaults>
</compile_context>

<pallas_src>
import functools

import jax
import jax.numpy as jnp
from jax.experimental import pallas as pl
from jax.experimental.pallas import tpu as pltpu


# ----------------------------------------------------------------------------
# Fused ResNeXt-block kernel (one grid step == one image)
# ----------------------------------------------------------------------------
def _resnext_block_kernel(*refs, stride, has_proj, H, W, Ho, Wo, bh1, bh2):
    if has_proj:
        (x_ref, w1_ref, b1_ref, w3_ref, b3_ref, w4_ref, wsc_ref, bias_ref,
         out_ref, y1p_ref) = refs
    else:
        (x_ref, w1_ref, b1_ref, w3_ref, b3_ref, w4_ref, bias_ref,
         out_ref, y1p_ref) = refs
        wsc_ref = None

    cin = x_ref.shape[3]
    cb = w1_ref.shape[1]

    # ---- weights / biases: loaded once (BN scale folded into the weights) ---
    w1 = w1_ref[...]                        # (Cin, Cb)   bf16
    b1 = b1_ref[...]                        # (1, Cb)     f32
    b3 = b3_ref[...]                        # (1, Cb)     f32
    w4 = w4_ref[...]                        # (Cb, Cout)  bf16
    bias = bias_ref[...]                    # (1, Cout)   f32
    wsc = wsc_ref[...] if has_proj else None  # (Cin, Cout) bf16

    # ---- zero ONLY the top/bottom halo rows of the bf16 scratch -------------
    # (left/right halo columns are rewritten by every stage-1 band store and
    #  the interior is fully overwritten each grid step, so no full memset.)
    zero_row = jnp.zeros((1, W + 2, cb), jnp.bfloat16)
    y1p_ref[0:1, :, :] = zero_row
    y1p_ref[H + 1:H + 2, :, :] = zero_row

    # ---- stage 1: 1x1 shrink conv + BN + ReLU over input-row bands ----------
    def stage1_band(h0, nrows):
        xr = x_ref[0, pl.ds(h0, nrows), :, :].reshape(nrows * W, cin)
        y = jnp.dot(xr, w1, preferred_element_type=jnp.float32) + b1
        y = jnp.maximum(y, 0.0).reshape(nrows, W, cb)
        zc = jnp.zeros((nrows, 1, cb), jnp.float32)
        # full-minor-dims store: [zero halo col | data | zero halo col]
        y1p_ref[pl.ds(h0 + 1, nrows), :, :] = jnp.concatenate(
            [zc, y, zc], axis=1).astype(jnp.bfloat16)

    nb1 = H // bh1
    if nb1 == 1 and H % bh1 == 0:
        stage1_band(0, bh1)                 # fully static offsets
    else:
        @pl.loop(0, nb1)
        def _(i):
            stage1_band(i * bh1, bh1)
        if H % bh1:
            stage1_band(nb1 * bh1, H % bh1)

    # Tap offsets inside the padded (and, for stride 2, parity-de-interleaved)
    # scratch: every (kh, kw) tap is a contiguous (band, Wo, Cb) slice.
    if stride == 1:
        kh_off, kw_off = (0, 1, 2), (0, 1, 2)
    else:
        kh_off, kw_off = (0, Ho + 1, 1), (0, Wo + 1, 1)

    # ---- stages 2-4 over output-row bands: grouped 3x3 (block-diag matmuls)
    #      + BN + ReLU, 1x1 expand + BN, shortcut, residual add, final ReLU ---
    def fused_band(r0, nrows):
        m = nrows * Wo
        acc = jnp.zeros((m, cb), jnp.float32)
        for kh in range(3):
            for kw in range(3):
                tap = y1p_ref[pl.ds(kh_off[kh] + r0, nrows),
                              pl.ds(kw_off[kw], Wo), :]      # (nrows, Wo, Cb)
                acc = acc + jnp.dot(tap.reshape(m, cb),
                                    w3_ref[kh * 3 + kw],     # (Cb, Cb) blockdiag
                                    preferred_element_type=jnp.float32)
        y3 = jnp.maximum(acc + b3, 0.0).astype(jnp.bfloat16)      # (m, Cb)
        o = jnp.dot(y3, w4, preferred_element_type=jnp.float32)   # (m, Cout)

        if has_proj and stride == 2:
            # 2x2 avg-pool (contiguous thanks to the parity layout) + 1x1 proj.
            x_odd = x_ref[0, pl.ds(r0, nrows), :, :]              # (nrows, W, Cin)
            x_evn = x_ref[0, pl.ds(Ho + r0, nrows), :, :]
            pooled = (x_odd[:, 0:Wo, :].astype(jnp.float32)
                      + x_odd[:, Wo:W, :].astype(jnp.float32)
                      + x_evn[:, 0:Wo, :].astype(jnp.float32)
                      + x_evn[:, Wo:W, :].astype(jnp.float32)) * 0.25
            pooled = pooled.reshape(m, cin).astype(jnp.bfloat16)
            o = o + jnp.dot(pooled, wsc, preferred_element_type=jnp.float32)
        elif has_proj:
            xs = x_ref[0, pl.ds(r0, nrows), :, :].reshape(m, cin)
            o = o + jnp.dot(xs, wsc, preferred_element_type=jnp.float32)
        else:
            # identity shortcut: plain add, no matmul / projection weight.
            o = o + x_ref[0, pl.ds(r0, nrows), :, :].reshape(m, cin).astype(
                jnp.float32)

        o = jnp.maximum(o + bias, 0.0)
        out_ref[0, pl.ds(r0 * Wo, m), :] = o.astype(out_ref.dtype)

    nb2 = Ho // bh2
    if nb2 == 1 and Ho % bh2 == 0:
        fused_band(0, bh2)                  # fully static offsets
    else:
        @pl.loop(0, nb2)
        def _(i):
            fused_band(i * bh2, bh2)
        if Ho % bh2:
            fused_band(nb2 * bh2, Ho % bh2)


# ----------------------------------------------------------------------------
# Wrapper: BN folding, block-diagonal weight packing, pallas_call
# ----------------------------------------------------------------------------
def _rows_per_band(n_rows, row_w, chan):
    # keep the f32 band accumulator around <=96 KiB and M around 256
    budget = max(8, (96 * 1024) // (4 * max(chan, 1)))
    target = max(1, min(budget, 256) // max(row_w, 1))
    return max(1, min(n_rows, target))


def resnext_block_forward(x_nchw, params, *, stride, group, has_proj):
    x = jnp.transpose(x_nchw, (0, 2, 3, 1))          # NCHW -> NHWC
    n, h, w, cin = x.shape
    cb = params["shrink"]["w"].shape[0]              # bottleneck channels
    cout = params["expand"]["w"].shape[0]
    assert cb % group == 0
    cbg = cb // group

    if stride == 2:
        assert h % 2 == 0 and w % 2 == 0, (h, w)
        ho, wo = h // 2, w // 2
    else:
        assert stride == 1
        ho, wo = h, w
    if not has_proj:
        assert stride == 1 and cin == cout, \
            "identity shortcut requires stride == 1 and Cin == Cout"

    eps = 1e-9                                       # BatchNorm2d(eps=1e-09)

    def fold(p):
        scale = p["gamma"] / jnp.sqrt(p["var"] + eps)
        bias = (p["b"] - p["mean"]) * scale + p["beta"]
        return scale, bias

    # conv_1x1_shrink (BN scale folded into the weight columns)
    p = params["shrink"]
    s1, b1 = fold(p)
    w1 = (p["w"][:, :, 0, 0].T * s1[None, :]).astype(jnp.bfloat16)     # (Cin, Cb)
    b1 = b1.reshape(1, cb).astype(jnp.float32)

    # conv_3 (grouped 3x3) -> 9 block-diagonal (Cb, Cb) tiles, BN scale folded
    p = params["conv3"]
    s3, b3 = fold(p)
    w3g = p["w"].reshape(group, cbg, cbg, 3, 3)                        # (g, co, ci, kh, kw)
    w3g = jnp.transpose(w3g, (3, 4, 0, 2, 1))                          # (kh, kw, g, ci, co)
    w3g = w3g * s3.reshape(group, 1, cbg)
    eye_g = jnp.eye(group, dtype=w3g.dtype)
    w3 = jnp.einsum('xygij,gh->xygihj', w3g, eye_g)                    # zero off-group blocks
    w3 = w3.reshape(9, cb, cb).astype(jnp.bfloat16)
    b3 = b3.reshape(1, cb).astype(jnp.float32)

    # conv_1x1_expand
    p = params["expand"]
    s4, b4 = fold(p)
    w4 = (p["w"][:, :, 0, 0].T * s4[None, :]).astype(jnp.bfloat16)     # (Cb, Cout)
    bias_out = b4

    # shortcut projection (only when has_proj)
    if has_proj:
        p = params["shortcut"]
        ssc, bsc = fold(p)
        wsc = (p["w"][:, :, 0, 0].T * ssc[None, :]).astype(jnp.bfloat16)
        bias_out = bias_out + bsc
    bias_out = bias_out.reshape(1, cout).astype(jnp.float32)

    # bf16 activations; for stride 2, parity-de-interleave H AND W ([odd|even])
    # so every 3x3 tap and the 2x2 avg-pool become contiguous slices.
    xb = x.astype(jnp.bfloat16)
    if stride == 2:
        xb = jnp.concatenate([xb[:, 1::2], xb[:, 0::2]], axis=1)
        xb = jnp.concatenate([xb[:, :, 1::2], xb[:, :, 0::2]], axis=2)

    bh1 = _rows_per_band(h, w, max(cin, cb))
    bh2 = _rows_per_band(ho, wo, max(cb, cout, cin))

    kernel = functools.partial(
        _resnext_block_kernel, stride=stride, has_proj=has_proj,
        H=h, W=w, Ho=ho, Wo=wo, bh1=bh1, bh2=bh2)

    operands = [xb, w1, b1, w3, b3, w4]
    in_specs = [
        pl.BlockSpec((1, h, w, cin), lambda i: (i, 0, 0, 0)),          # x
        pl.BlockSpec((cin, cb), lambda i: (0, 0)),                     # w1
        pl.BlockSpec((1, cb), lambda i: (0, 0)),                       # b1
        pl.BlockSpec((9, cb, cb), lambda i: (0, 0, 0)),                # w3 (blockdiag)
        pl.BlockSpec((1, cb), lambda i: (0, 0)),                       # b3
        pl.BlockSpec((cb, cout), lambda i: (0, 0)),                    # w4
    ]
    if has_proj:
        operands.append(wsc)
        in_specs.append(pl.BlockSpec((cin, cout), lambda i: (0, 0)))   # wsc
    operands.append(bias_out)
    in_specs.append(pl.BlockSpec((1, cout), lambda i: (0, 0)))         # bias

    out = pl.pallas_call(
        kernel,
        out_shape=jax.ShapeDtypeStruct((n, ho * wo, cout), jnp.float32),
        grid=(n,),
        in_specs=in_specs,
        out_specs=pl.BlockSpec((1, ho * wo, cout), lambda i: (i, 0, 0)),
        scratch_shapes=[pltpu.VMEM((h + 2, w + 2, cb), jnp.bfloat16)],
        compiler_params=pltpu.CompilerParams(
            dimension_semantics=("parallel",),
            vmem_limit_bytes=48 * 1024 * 1024),
    )(*operands)

    out = out.reshape(n, ho, wo, cout)
    return jnp.transpose(out, (0, 3, 1, 2))          # NHWC -> NCHW


# ----------------------------------------------------------------------------
# Parameter construction + pure-JAX reference (mirrors the PyTorch module,
# eval-mode BN)
# ----------------------------------------------------------------------------
def make_conv_bn(key, cin, cout, k, groups):
    ks = jax.random.split(key, 6)
    return dict(
        w=jax.random.normal(ks[0], (cout, cin // groups, k, k), jnp.float32) * 0.1,
        b=jax.random.normal(ks[1], (cout,), jnp.float32) * 0.05,
        gamma=1.0 + 0.1 * jax.random.normal(ks[2], (cout,), jnp.float32),
        beta=0.05 * jax.random.normal(ks[3], (cout,), jnp.float32),
        mean=0.05 * jax.random.normal(ks[4], (cout,), jnp.float32),
        var=jax.random.uniform(ks[5], (cout,), jnp.float32, minval=0.5, maxval=1.5),
    )


def reference_forward(x_nchw, params, *, stride, group, has_proj, eps=1e-9):
    def conv(x, w, b, s, pad, groups):
        y = jax.lax.conv_general_dilated(
            x, w, (s, s), [(pad, pad), (pad, pad)],
            dimension_numbers=("NCHW", "OIHW", "NCHW"),
            feature_group_count=groups)
        return y + b[None, :, None, None]

    def bn(y, p):
        return (p["gamma"][None, :, None, None]
                * (y - p["mean"][None, :, None, None])
                / jnp.sqrt(p["var"][None, :, None, None] + eps)
                + p["beta"][None, :, None, None])

    x = x_nchw
    proj = x
    if has_proj:
        if stride == 2:
            n, c, h, w = proj.shape
            proj = proj.reshape(n, c, h // 2, 2, w // 2, 2).mean(axis=(3, 5))
        p = params["shortcut"]
        proj = bn(conv(proj, p["w"], p["b"], 1, 0, 1), p)
    p = params["shrink"]
    y = jax.nn.relu(bn(conv(x, p["w"], p["b"], 1, 0, 1), p))
    p = params["conv3"]
    y = jax.nn.relu(bn(conv(y, p["w"], p["b"], stride, 1, group), p))
    p = params["expand"]
    y = bn(conv(y, p["w"], p["b"], 1, 0, 1), p)
    return jax.nn.relu(y + proj)


# ----------------------------------------------------------------------------
if __name__ == "__main__":
    key = jax.random.PRNGKey(0)

    def run_case(name, channels_input, channels, stride, group, has_proj, k):
        bottleneck = channels // 4
        assert bottleneck % group == 0 and (bottleneck // group) % 4 == 0
        kx, k1, k2, k3, k4 = jax.random.split(k, 5)
        x = jax.random.normal(kx, (2, channels_input, 16, 16), jnp.float32)

        params = {
            "shrink": make_conv_bn(k2, channels_input, bottleneck, 1, 1),
            "conv3": make_conv_bn(k3, bottleneck, bottleneck, 3, group),
            "expand": make_conv_bn(k4, bottleneck, channels, 1, 1),
        }
        if has_proj:
            params["shortcut"] = make_conv_bn(k1, channels_input, channels, 1, 1)

        fwd = jax.jit(functools.partial(resnext_block_forward, stride=stride,
                                        group=group, has_proj=has_proj))
        out = jax.block_until_ready(fwd(x, params))

        ref = reference_forward(x, params, stride=stride, group=group,
                                has_proj=has_proj)
        assert out.shape == ref.shape, (name, out.shape, ref.shape)
        max_err = float(jnp.max(jnp.abs(out - ref)))
        ref_mag = float(jnp.max(jnp.abs(ref)))
        # bf16 matmul operands / bf16 residual vs. f32 reference.
        assert max_err < 2e-2 + 3e-2 * ref_mag, (name, max_err, ref_mag)

    ka, kb = jax.random.split(key)
    # projection shortcut + stride 2 (avgpool path)
    run_case("proj_stride2", 16, 32, 2, 2, True, ka)
    # identity shortcut + stride 1 (no projection weight, plain residual add)
    run_case("identity_stride1", 32, 32, 1, 2, False, kb)

    print("KERNEL_OK")
</pallas_src>

<mosaic_0001>
module attributes {stable_mosaic.version = 11 : i64} {
  func.func @_resnext_block_kernel(%arg0: i32, %arg1: memref<1x16x16x16xbf16, #tpu.memory_space<vmem>>, %arg2: memref<16x8xbf16, #tpu.memory_space<vmem>>, %arg3: memref<1x8xf32, #tpu.memory_space<vmem>>, %arg4: memref<9x8x8xbf16, #tpu.memory_space<vmem>>, %arg5: memref<1x8xf32, #tpu.memory_space<vmem>>, %arg6: memref<8x32xbf16, #tpu.memory_space<vmem>>, %arg7: memref<16x32xbf16, #tpu.memory_space<vmem>>, %arg8: memref<1x32xf32, #tpu.memory_space<vmem>>, %arg9: memref<1x64x32xf32, #tpu.memory_space<vmem>>, %arg10: memref<18x18x8xbf16, #tpu.memory_space<vmem>>) attributes {dimension_semantics = [#tpu.dimension_semantics<parallel>], iteration_bounds = array<i64: 2>, scalar_prefetch = 0 : i64, scratch_operands = 1 : i64, tpu.core_type = #tpu.core_type<tc>, window_params = [{transform_indices = @transform_0, window_bounds = array<i64: 1, 16, 16, 16>}, {pipeline_mode = #tpu.pipeline_mode<synchronous>, transform_indices = @transform_1, window_bounds = array<i64: 16, 8>}, {pipeline_mode = #tpu.pipeline_mode<synchronous>, transform_indices = @transform_2, window_bounds = array<i64: 1, 8>}, {pipeline_mode = #tpu.pipeline_mode<synchronous>, transform_indices = @transform_3, window_bounds = array<i64: 9, 8, 8>}, {pipeline_mode = #tpu.pipeline_mode<synchronous>, transform_indices = @transform_4, window_bounds = array<i64: 1, 8>}, {pipeline_mode = #tpu.pipeline_mode<synchronous>, transform_indices = @transform_5, window_bounds = array<i64: 8, 32>}, {pipeline_mode = #tpu.pipeline_mode<synchronous>, transform_indices = @transform_6, window_bounds = array<i64: 16, 32>}, {pipeline_mode = #tpu.pipeline_mode<synchronous>, transform_indices = @transform_7, window_bounds = array<i64: 1, 32>}, {transform_indices = @transform_8, window_bounds = array<i64: 1, 64, 32>}]} {
    %c0 = arith.constant 0 : index
    %c0_0 = arith.constant 0 : index
    %0 = vector.load %arg2[%c0, %c0_0] : memref<16x8xbf16, #tpu.memory_space<vmem>>, vector<16x8xbf16>
    %c0_1 = arith.constant 0 : index
    %c0_2 = arith.constant 0 : index
    %1 = vector.load %arg3[%c0_1, %c0_2] : memref<1x8xf32, #tpu.memory_space<vmem>>, vector<1x8xf32>
    %c0_3 = arith.constant 0 : index
    %c0_4 = arith.constant 0 : index
    %2 = vector.load %arg5[%c0_3, %c0_4] : memref<1x8xf32, #tpu.memory_space<vmem>>, vector<1x8xf32>
    %c0_5 = arith.constant 0 : index
    %c0_6 = arith.constant 0 : index
    %3 = vector.load %arg6[%c0_5, %c0_6] : memref<8x32xbf16, #tpu.memory_space<vmem>>, vector<8x32xbf16>
    %c0_7 = arith.constant 0 : index
    %c0_8 = arith.constant 0 : index
    %4 = vector.load %arg8[%c0_7, %c0_8] : memref<1x32xf32, #tpu.memory_space<vmem>>, vector<1x32xf32>
    %c0_9 = arith.constant 0 : index
    %c0_10 = arith.constant 0 : index
    %5 = vector.load %arg7[%c0_9, %c0_10] : memref<16x32xbf16, #tpu.memory_space<vmem>>, vector<16x32xbf16>
    %cst = arith.constant 0.000000e+00 : bf16
    %6 = vector.broadcast %cst : bf16 to vector<1x18x8xbf16>
    %c0_11 = arith.constant 0 : index
    %c0_12 = arith.constant 0 : index
    %c0_13 = arith.constant 0 : index
    %7 = vector.load %arg10[%c0_11, %c0_12, %c0_13] : memref<18x18x8xbf16, #tpu.memory_space<vmem>>, vector<1x18x8xbf16>
    tpu.vector_store %arg10[%c0_11, %c0_12, %c0_13], %6 {strides = array<i32>} : memref<18x18x8xbf16, #tpu.memory_space<vmem>>, vector<1x18x8xbf16>,
    %c17 = arith.constant 17 : index
    %c0_14 = arith.constant 0 : index
    %c0_15 = arith.constant 0 : index
    %8 = vector.load %arg10[%c17, %c0_14, %c0_15] : memref<18x18x8xbf16, #tpu.memory_space<vmem>>, vector<1x18x8xbf16>
    tpu.vector_store %arg10[%c17, %c0_14, %c0_15], %6 {strides = array<i32>} : memref<18x18x8xbf16, #tpu.memory_space<vmem>>, vector<1x18x8xbf16>,
    %c0_16 = arith.constant 0 : index
    %c0_17 = arith.constant 0 : index
    %c0_18 = arith.constant 0 : index
    %c0_19 = arith.constant 0 : index
    %9 = vector.load %arg1[%c0_16, %c0_17, %c0_18, %c0_19] : memref<1x16x16x16xbf16, #tpu.memory_space<vmem>>, vector<1x16x16x16xbf16>
    %10 = vector.shape_cast %9 : vector<1x16x16x16xbf16> to vector<16x16x16xbf16>
    %11 = vector.shape_cast %10 : vector<16x16x16xbf16> to vector<256x16xbf16>
    %cst_20 = arith.constant dense<0.000000e+00> : vector<256x8xf32>
    %12 = tpu.matmul %11, %0, %cst_20 {dimension_numbers = #tpu.dot_dimension_numbers<[1], [0], [0], [1], [0, 0, 1, 1], [], []>} : vector<256x16xbf16>, vector<16x8xbf16>, vector<256x8xf32> -> vector<256x8xf32>
    %13 = vector.broadcast %1 : vector<1x8xf32> to vector<256x8xf32>
    %14 = arith.addf %12, %13 : vector<256x8xf32>
    %cst_21 = arith.constant 0.000000e+00 : f32
    %15 = vector.broadcast %cst_21 : f32 to vector<256x8xf32>
    %16 = arith.maximumf %14, %15 : vector<256x8xf32>
    %17 = vector.shape_cast %16 : vector<256x8xf32> to vector<16x16x8xf32>
    %cst_22 = arith.constant 0.000000e+00 : f32
    %18 = vector.broadcast %cst_22 : f32 to vector<16x1x8xf32>
    %19 = tpu.concatenate %18, %17, %18 in 1 : vector<16x1x8xf32>, vector<16x16x8xf32>, vector<16x1x8xf32> -> vector<16x18x8xf32>
    %20 = arith.truncf %19 : vector<16x18x8xf32> to vector<16x18x8xbf16>
    %c1 = arith.constant 1 : index
    %c0_23 = arith.constant 0 : index
    %c0_24 = arith.constant 0 : index
    %21 = vector.load %arg10[%c1, %c0_23, %c0_24] : memref<18x18x8xbf16, #tpu.memory_space<vmem>>, vector<16x18x8xbf16>
    tpu.vector_store %arg10[%c1, %c0_23, %c0_24], %20 {strides = array<i32>} : memref<18x18x8xbf16, #tpu.memory_space<vmem>>, vector<16x18x8xbf16>,
    %cst_25 = arith.constant 0.000000e+00 : f32
    %22 = vector.broadcast %cst_25 : f32 to vector<64x8xf32>
    %c0_26 = arith.constant 0 : index
    %c0_27 = arith.constant 0 : index
    %c0_28 = arith.constant 0 : index
    %23 = vector.load %arg10[%c0_26, %c0_27, %c0_28] : memref<18x18x8xbf16, #tpu.memory_space<vmem>>, vector<8x8x8xbf16>
    %24 = vector.shape_cast %23 : vector<8x8x8xbf16> to vector<64x8xbf16>
    %c0_29 = arith.constant 0 : index
    %c0_30 = arith.constant 0 : index
    %c0_31 = arith.constant 0 : index
    %25 = vector.load %arg4[%c0_29, %c0_30, %c0_31] : memref<9x8x8xbf16, #tpu.memory_space<vmem>>, vector<1x8x8xbf16>
    %26 = vector.shape_cast %25 : vector<1x8x8xbf16> to vector<8x8xbf16>
    %cst_32 = arith.constant dense<0.000000e+00> : vector<64x8xf32>
    %27 = tpu.matmul %24, %26, %cst_32 {dimension_numbers = #tpu.dot_dimension_numbers<[1], [0], [0], [1], [0, 0, 1, 1], [], []>} : vector<64x8xbf16>, vector<8x8xbf16>, vector<64x8xf32> -> vector<64x8xf32>
    %28 = arith.addf %22, %27 : vector<64x8xf32>
    %c0_33 = arith.constant 0 : index
    %c9 = arith.constant 9 : index
    %c0_34 = arith.constant 0 : index
    %29 = vector.load %arg10[%c0_33, %c9, %c0_34] : memref<18x18x8xbf16, #tpu.memory_space<vmem>>, vector<8x8x8xbf16>
    %30 = vector.shape_cast %29 : vector<8x8x8xbf16> to vector<64x8xbf16>
    %c1_35 = arith.constant 1 : index
    %c0_36 = arith.constant 0 : index
    %c0_37 = arith.constant 0 : index
    %31 = vector.load %arg4[%c1_35, %c0_36, %c0_37] : memref<9x8x8xbf16, #tpu.memory_space<vmem>>, vector<1x8x8xbf16>
    %32 = vector.shape_cast %31 : vector<1x8x8xbf16> to vector<8x8xbf16>
    %cst_38 = arith.constant dense<0.000000e+00> : vector<64x8xf32>
    %33 = tpu.matmul %30, %32, %cst_38 {dimension_numbers = #tpu.dot_dimension_numbers<[1], [0], [0], [1], [0, 0, 1, 1], [], []>} : vector<64x8xbf16>, vector<8x8xbf16>, vector<64x8xf32> -> vector<64x8xf32>
    %34 = arith.addf %28, %33 : vector<64x8xf32>
    %c0_39 = arith.constant 0 : index
    %c1_40 = arith.constant 1 : index
    %c0_41 = arith.constant 0 : index
    %35 = vector.load %arg10[%c0_39, %c1_40, %c0_41] : memref<18x18x8xbf16, #tpu.memory_space<vmem>>, vector<8x8x8xbf16>
    %36 = vector.shape_cast %35 : vector<8x8x8xbf16> to vector<64x8xbf16>
    %c2 = arith.constant 2 : index
    %c0_42 = arith.constant 0 : index
    %c0_43 = arith.constant 0 : index
    %37 = vector.load %arg4[%c2, %c0_42, %c0_43] : memref<9x8x8xbf16, #tpu.memory_space<vmem>>, vector<1x8x8xbf16>
    %38 = vector.shape_cast %37 : vector<1x8x8xbf16> to vector<8x8xbf16>
    %cst_44 = arith.constant dense<0.000000e+00> : vector<64x8xf32>
    %39 = tpu.matmul %36, %38, %cst_44 {dimension_numbers = #tpu.dot_dimension_numbers<[1], [0], [0], [1], [0, 0, 1, 1], [], []>} : vector<64x8xbf16>, vector<8x8xbf16>, vector<64x8xf32> -> vector<64x8xf32>
    %40 = arith.addf %34, %39 : vector<64x8xf32>
    %c9_45 = arith.constant 9 : index
    %c0_46 = arith.constant 0 : index
    %c0_47 = arith.constant 0 : index
    %41 = vector.load %arg10[%c9_45, %c0_46, %c0_47] : memref<18x18x8xbf16, #tpu.memory_space<vmem>>, vector<8x8x8xbf16>
    %42 = vector.shape_cast %41 : vector<8x8x8xbf16> to vector<64x8xbf16>
    %c3 = arith.constant 3 : index
    %c0_48 = arith.constant 0 : index
    %c0_49 = arith.constant 0 : index
    %43 = vector.load %arg4[%c3, %c0_48, %c0_49] : memref<9x8x8xbf16, #tpu.memory_space<vmem>>, vector<1x8x8xbf16>
    %44 = vector.shape_cast %43 : vector<1x8x8xbf16> to vector<8x8xbf16>
    %cst_50 = arith.constant dense<0.000000e+00> : vector<64x8xf32>
    %45 = tpu.matmul %42, %44, %cst_50 {dimension_numbers = #tpu.dot_dimension_numbers<[1], [0], [0], [1], [0, 0, 1, 1], [], []>} : vector<64x8xbf16>, vector<8x8xbf16>, vector<64x8xf32> -> vector<64x8xf32>
    %46 = arith.addf %40, %45 : vector<64x8xf32>
    %c9_51 = arith.constant 9 : index
    %c9_52 = arith.constant 9 : index
    %c0_53 = arith.constant 0 : index
    %47 = vector.load %arg10[%c9_51, %c9_52, %c0_53] : memref<18x18x8xbf16, #tpu.memory_space<vmem>>, vector<8x8x8xbf16>
    %48 = vector.shape_cast %47 : vector<8x8x8xbf16> to vector<64x8xbf16>
    %c4 = arith.constant 4 : index
    %c0_54 = arith.constant 0 : index
    %c0_55 = arith.constant 0 : index
    %49 = vector.load %arg4[%c4, %c0_54, %c0_55] : memref<9x8x8xbf16, #tpu.memory_space<vmem>>, vector<1x8x8xbf16>
    %50 = vector.shape_cast %49 : vector<1x8x8xbf16> to vector<8x8xbf16>
    %cst_56 = arith.constant dense<0.000000e+00> : vector<64x8xf32>
    %51 = tpu.matmul %48, %50, %cst_56 {dimension_numbers = #tpu.dot_dimension_numbers<[1], [0], [0], [1], [0, 0, 1, 1], [], []>} : vector<64x8xbf16>, vector<8x8xbf16>, vector<64x8xf32> -> vector<64x8xf32>
    %52 = arith.addf %46, %51 : vector<64x8xf32>
    %c9_57 = arith.constant 9 : index
    %c1_58 = arith.constant 1 : index
    %c0_59 = arith.constant 0 : index
    %53 = vector.load %arg10[%c9_57, %c1_58, %c0_59] : memref<18x18x8xbf16, #tpu.memory_space<vmem>>, vector<8x8x8xbf16>
    %54 = vector.shape_cast %53 : vector<8x8x8xbf16> to vector<64x8xbf16>
    %c5 = arith.constant 5 : index
    %c0_60 = arith.constant 0 : index
    %c0_61 = arith.constant 0 : index
    %55 = vector.load %arg4[%c5, %c0_60, %c0_61] : memref<9x8x8xbf16, #tpu.memory_space<vmem>>, vector<1x8x8xbf16>
    %56 = vector.shape_cast %55 : vector<1x8x8xbf16> to vector<8x8xbf16>
    %cst_62 = arith.constant dense<0.000000e+00> : vector<64x8xf32>
    %57 = tpu.matmul %54, %56, %cst_62 {dimension_numbers = #tpu.dot_dimension_numbers<[1], [0], [0], [1], [0, 0, 1, 1], [], []>} : vector<64x8xbf16>, vector<8x8xbf16>, vector<64x8xf32> -> vector<64x8xf32>
    %58 = arith.addf %52, %57 : vector<64x8xf32>
    %c1_63 = arith.constant 1 : index
    %c0_64 = arith.constant 0 : index
    %c0_65 = arith.constant 0 : index
    %59 = vector.load %arg10[%c1_63, %c0_64, %c0_65] : memref<18x18x8xbf16, #tpu.memory_space<vmem>>, vector<8x8x8xbf16>
    %60 = vector.shape_cast %59 : vector<8x8x8xbf16> to vector<64x8xbf16>
    %c6 = arith.constant 6 : index
    %c0_66 = arith.constant 0 : index
    %c0_67 = arith.constant 0 : index
    %61 = vector.load %arg4[%c6, %c0_66, %c0_67] : memref<9x8x8xbf16, #tpu.memory_space<vmem>>, vector<1x8x8xbf16>
    %62 = vector.shape_cast %61 : vector<1x8x8xbf16> to vector<8x8xbf16>
    %cst_68 = arith.constant dense<0.000000e+00> : vector<64x8xf32>
    %63 = tpu.matmul %60, %62, %cst_68 {dimension_numbers = #tpu.dot_dimension_numbers<[1], [0], [0], [1], [0, 0, 1, 1], [], []>} : vector<64x8xbf16>, vector<8x8xbf16>, vector<64x8xf32> -> vector<64x8xf32>
    %64 = arith.addf %58, %63 : vector<64x8xf32>
    %c1_69 = arith.constant 1 : index
    %c9_70 = arith.constant 9 : index
    %c0_71 = arith.constant 0 : index
    %65 = vector.load %arg10[%c1_69, %c9_70, %c0_71] : memref<18x18x8xbf16, #tpu.memory_space<vmem>>, vector<8x8x8xbf16>
    %66 = vector.shape_cast %65 : vector<8x8x8xbf16> to vector<64x8xbf16>
    %c7 = arith.constant 7 : index
    %c0_72 = arith.constant 0 : index
    %c0_73 = arith.constant 0 : index
    %67 = vector.load %arg4[%c7, %c0_72, %c0_73] : memref<9x8x8xbf16, #tpu.memory_space<vmem>>, vector<1x8x8xbf16>
    %68 = vector.shape_cast %67 : vector<1x8x8xbf16> to vector<8x8xbf16>
    %cst_74 = arith.constant dense<0.000000e+00> : vector<64x8xf32>
    %69 = tpu.matmul %66, %68, %cst_74 {dimension_numbers = #tpu.dot_dimension_numbers<[1], [0], [0], [1], [0, 0, 1, 1], [], []>} : vector<64x8xbf16>, vector<8x8xbf16>, vector<64x8xf32> -> vector<64x8xf32>
    %70 = arith.addf %64, %69 : vector<64x8xf32>
    %c1_75 = arith.constant 1 : index
    %c1_76 = arith.constant 1 : index
    %c0_77 = arith.constant 0 : index
    %71 = vector.load %arg10[%c1_75, %c1_76, %c0_77] : memref<18x18x8xbf16, #tpu.memory_space<vmem>>, vector<8x8x8xbf16>
    %72 = vector.shape_cast %71 : vector<8x8x8xbf16> to vector<64x8xbf16>
    %c8 = arith.constant 8 : index
    %c0_78 = arith.constant 0 : index
    %c0_79 = arith.constant 0 : index
    %73 = vector.load %arg4[%c8, %c0_78, %c0_79] : memref<9x8x8xbf16, #tpu.memory_space<vmem>>, vector<1x8x8xbf16>
    %74 = vector.shape_cast %73 : vector<1x8x8xbf16> to vector<8x8xbf16>
    %cst_80 = arith.constant dense<0.000000e+00> : vector<64x8xf32>
    %75 = tpu.matmul %72, %74, %cst_80 {dimension_numbers = #tpu.dot_dimension_numbers<[1], [0], [0], [1], [0, 0, 1, 1], [], []>} : vector<64x8xbf16>, vector<8x8xbf16>, vector<64x8xf32> -> vector<64x8xf32>
    %76 = arith.addf %70, %75 : vector<64x8xf32>
    %77 = vector.broadcast %2 : vector<1x8xf32> to vector<64x8xf32>
    %78 = arith.addf %76, %77 : vector<64x8xf32>
    %cst_81 = arith.constant 0.000000e+00 : f32
    %79 = vector.broadcast %cst_81 : f32 to vector<64x8xf32>
    %80 = arith.maximumf %78, %79 : vector<64x8xf32>
    %81 = arith.truncf %80 : vector<64x8xf32> to vector<64x8xbf16>
    %cst_82 = arith.constant dense<0.000000e+00> : vector<64x32xf32>
    %82 = tpu.matmul %81, %3, %cst_82 {dimension_numbers = #tpu.dot_dimension_numbers<[1], [0], [0], [1], [0, 0, 1, 1], [], []>} : vector<64x8xbf16>, vector<8x32xbf16>, vector<64x32xf32> -> vector<64x32xf32>
    %c0_83 = arith.constant 0 : index
    %c0_84 = arith.constant 0 : index
    %c0_85 = arith.constant 0 : index
    %c0_86 = arith.constant 0 : index
    %83 = vector.load %arg1[%c0_83, %c0_84, %c0_85, %c0_86] : memref<1x16x16x16xbf16, #tpu.memory_space<vmem>>, vector<1x8x16x16xbf16>
    %84 = vector.shape_cast %83 : vector<1x8x16x16xbf16> to vector<8x16x16xbf16>
    %c0_87 = arith.constant 0 : index
    %c8_88 = arith.constant 8 : index
    %c0_89 = arith.constant 0 : index
    %c0_90 = arith.constant 0 : index
    %85 = vector.load %arg1[%c0_87, %c8_88, %c0_89, %c0_90] : memref<1x16x16x16xbf16, #tpu.memory_space<vmem>>, vector<1x8x16x16xbf16>
    %86 = vector.shape_cast %85 : vector<1x8x16x16xbf16> to vector<8x16x16xbf16>
    %87 = vector.extract_strided_slice %84 {offsets = [0, 0, 0], sizes = [8, 8, 16], strides = [1, 1, 1]} : vector<8x16x16xbf16> to vector<8x8x16xbf16>
    %88 = arith.extf %87 : vector<8x8x16xbf16> to vector<8x8x16xf32>
    %89 = vector.extract_strided_slice %84 {offsets = [0, 8, 0], sizes = [8, 8, 16], strides = [1, 1, 1]} : vector<8x16x16xbf16> to vector<8x8x16xbf16>
    %90 = arith.extf %89 : vector<8x8x16xbf16> to vector<8x8x16xf32>
    %91 = arith.addf %88, %90 : vector<8x8x16xf32>
    %92 = vector.extract_strided_slice %86 {offsets = [0, 0, 0], sizes = [8, 8, 16], strides = [1, 1, 1]} : vector<8x16x16xbf16> to vector<8x8x16xbf16>
    %93 = arith.extf %92 : vector<8x8x16xbf16> to vector<8x8x16xf32>
    %94 = arith.addf %91, %93 : vector<8x8x16xf32>
    %95 = vector.extract_strided_slice %86 {offsets = [0, 8, 0], sizes = [8, 8, 16], strides = [1, 1, 1]} : vector<8x16x16xbf16> to vector<8x8x16xbf16>
    %96 = arith.extf %95 : vector<8x8x16xbf16> to vector<8x8x16xf32>
    %97 = arith.addf %94, %96 : vector<8x8x16xf32>
    %cst_91 = arith.constant 2.500000e-01 : f32
    %98 = vector.broadcast %cst_91 : f32 to vector<8x8x16xf32>
    %99 = arith.mulf %97, %98 : vector<8x8x16xf32>
    %100 = vector.shape_cast %99 : vector<8x8x16xf32> to vector<64x16xf32>
    %101 = arith.truncf %100 : vector<64x16xf32> to vector<64x16xbf16>
    %cst_92 = arith.constant dense<0.000000e+00> : vector<64x32xf32>
    %102 = tpu.matmul %101, %5, %cst_92 {dimension_numbers = #tpu.dot_dimension_numbers<[1], [0], [0], [1], [0, 0, 1, 1], [], []>} : vector<64x16xbf16>, vector<16x32xbf16>, vector<64x32xf32> -> vector<64x32xf32>
    %103 = arith.addf %82, %102 : vector<64x32xf32>
    %104 = vector.broadcast %4 : vector<1x32xf32> to vector<64x32xf32>
    %105 = arith.addf %103, %104 : vector<64x32xf32>
    %cst_93 = arith.constant 0.000000e+00 : f32
    %106 = vector.broadcast %cst_93 : f32 to vector<64x32xf32>
    %107 = arith.maximumf %105, %106 : vector<64x32xf32>
    %c0_94 = arith.constant 0 : index
    %c0_95 = arith.constant 0 : index
    %c0_96 = arith.constant 0 : index
    %108 = vector.load %arg9[%c0_94, %c0_95, %c0_96] : memref<1x64x32xf32, #tpu.memory_space<vmem>>, vector<1x64x32xf32>
    %109 = vector.shape_cast %108 : vector<1x64x32xf32> to vector<64x32xf32>
    %110 = vector.shape_cast %107 : vector<64x32xf32> to vector<1x64x32xf32>
    tpu.vector_store %arg9[%c0_94, %c0_95, %c0_96], %110 {strides = array<i32>} : memref<1x64x32xf32, #tpu.memory_space<vmem>>, vector<1x64x32xf32>,
    return
  }
  func.func @transform_0(%arg0: i32) -> (i32, i32, i32, i32) {
    %c0_i32 = arith.constant 0 : i32
    %c0_i32_0 = arith.constant 0 : i32
    %c0_i32_1 = arith.constant 0 : i32
    %c0_i32_2 = arith.constant 0 : i32
    return %arg0, %c0_i32, %c0_i32_0, %c0_i32_1 : i32, i32, i32, i32
  }
  func.func @transform_1(%arg0: i32) -> (i32, i32) {
    %c0_i32 = arith.constant 0 : i32
    %c0_i32_0 = arith.constant 0 : i32
    %c0_i32_1 = arith.constant 0 : i32
    return %c0_i32, %c0_i32_0 : i32, i32
  }
  func.func @transform_2(%arg0: i32) -> (i32, i32) {
    %c0_i32 = arith.constant 0 : i32
    %c0_i32_0 = arith.constant 0 : i32
    %c0_i32_1 = arith.constant 0 : i32
    return %c0_i32, %c0_i32_0 : i32, i32
  }
  func.func @transform_3(%arg0: i32) -> (i32, i32, i32) {
    %c0_i32 = arith.constant 0 : i32
    %c0_i32_0 = arith.constant 0 : i32
    %c0_i32_1 = arith.constant 0 : i32
    %c0_i32_2 = arith.constant 0 : i32
    return %c0_i32, %c0_i32_0, %c0_i32_1 : i32, i32, i32
  }
  func.func @transform_4(%arg0: i32) -> (i32, i32) {
    %c0_i32 = arith.constant 0 : i32
    %c0_i32_0 = arith.constant 0 : i32
    %c0_i32_1 = arith.constant 0 : i32
    return %c0_i32, %c0_i32_0 : i32, i32
  }
  func.func @transform_5(%arg0: i32) -> (i32, i32) {
    %c0_i32 = arith.constant 0 : i32
    %c0_i32_0 = arith.constant 0 : i32
    %c0_i32_1 = arith.constant 0 : i32
    return %c0_i32, %c0_i32_0 : i32, i32
  }
  func.func @transform_6(%arg0: i32) -> (i32, i32) {
    %c0_i32 = arith.constant 0 : i32
    %c0_i32_0 = arith.constant 0 : i32
    %c0_i32_1 = arith.constant 0 : i32
    return %c0_i32, %c0_i32_0 : i32, i32
  }
  func.func @transform_7(%arg0: i32) -> (i32, i32) {
    %c0_i32 = arith.constant 0 : i32
    %c0_i32_0 = arith.constant 0 : i32
    %c0_i32_1 = arith.constant 0 : i32
    return %c0_i32, %c0_i32_0 : i32, i32
  }
  func.func @transform_8(%arg0: i32) -> (i32, i32, i32) {
    %c0_i32 = arith.constant 0 : i32
    %c0_i32_0 = arith.constant 0 : i32
    %c0_i32_1 = arith.constant 0 : i32
    return %arg0, %c0_i32, %c0_i32_0 : i32, i32, i32
  }
}

</mosaic_0001>

<llo_original>
// kernel: mul.27
$region0: #{mul.27}
  %s0 = inlined_call_operand.vmem [shape: f32[8], index: 0, kind: input, shape index: {}]
  %s1 = inlined_call_operand.vmem [shape: f32[2,4], index: 1, kind: output, shape index: {}]
  $region1: #{mul.27} parent=0
    #allocation0 [shape = 'u8[4096]{0}', space=vmem, size = 0x1000, scoped, tag = 'scoped mem for output reshape']
    #allocation1 [shape = 'u8[4096]{0}', space=vmem, size = 0x1000, scoped, tag = 'scoped mem for input reshape']
    %s3 = ssub.s32 2, 1
    %v4 = vld [vmem:[%s0] sm:%s3]
    %5 = vst [vmem:[#allocation1] sm:%s3] %v4
    %v6 = vld [vmem:[#allocation1] sm:$0x1]
    %vm7 = vcmask 31744
    %8 = vst.msk [vmem:[#allocation0] sm:$0x1] %vm7, %v6
    %v9 = vld [vmem:[#allocation1] sm:$0x1]
    %10 = vrot.lane.b32.xlu0 %v9, 124
    %v11 = vpop.permute.xlu0 %10
    %vm12 = vcmask 31744
    %s13 = scalar_lea.vmem [#allocation0], 1
    %14 = vst.msk [vmem:[%s13] sm:$0x1] %vm12, %v11
    %s16 = ssub.s32 4, 1
    %v17 = vld [vmem:[#allocation0] sm:%s16]
    %s19 = ssub.s32 4, 1
    %20 = vst [vmem:[%s1] sm:%s19] %v17

// kernel: resnext_block_forward.1
$region0: #{resnext_block_forward.1}
  #allocation0 [shape = 'u32[]', space=smem, size = 0x4, offset = 0x4, fixed_abs, tag = 'smem constant byte address 0x4 - core index']
  #allocation1 [shape = 'u32[72,128]{1,0:T(1,128)}', space=vmem, size = 0x9000, scoped, tag = 'internal scratch']
  #allocation2 [shape = 'bf16[18,18,8]{2,1,0:T(8,128)(2,1)}', space=vmem, size = 0x1b000, scoped, tag = 'scratch operand']
  %s0 = inlined_call_operand.vmem [shape: bf16[2,16,16,16], index: 0, kind: input, shape index: {}]
  %s1 = inlined_call_operand.vmem [shape: bf16[16,8], index: 1, kind: input, shape index: {}]
  %s2 = inlined_call_operand.vmem [shape: f32[1,8], index: 2, kind: input, shape index: {}]
  %s3 = inlined_call_operand.vmem [shape: bf16[9,8,8], index: 3, kind: input, shape index: {}]
  %s4 = inlined_call_operand.vmem [shape: f32[1,8], index: 4, kind: input, shape index: {}]
  %s5 = inlined_call_operand.vmem [shape: bf16[8,32], index: 5, kind: input, shape index: {}]
  %s6 = inlined_call_operand.vmem [shape: bf16[16,32], index: 6, kind: input, shape index: {}]
  %s7 = inlined_call_operand.vmem [shape: f32[1,32], index: 7, kind: input, shape index: {}]
  %s8 = inlined_call_operand.hbm [shape: f32[2,64,32], index: 8, kind: output, shape index: {}]
  %s9 = sld [smem:[#allocation0]]
  $region65: #{resnext_block_forward.1} parent=0
    _
  %s11 = ssub.s32 1, %s9
  %s12 = scalar_select 0, %s11, %s9
  $region1: #{resnext_block_forward.1} parent=0
    #allocation3 [shape = 'u8[65536]{0}', space=vmem, size = 0x10000, scoped, tag = 'output window, operand 0']
    #allocation4 [shape = 's32[2]{0}', space=sflag, size = 0x8, scoped, tag = 'scoped memory for resnext_block_forward.1']
    %13 = vsyncpa [#allocation4], 0
    %s14 = scalar_lea.sflag [#allocation4], 1
    %15 = vsyncpa %s14, 0
    loop: start=0, step=1, limit=4
    $region2: #{resnext_block_forward.1} parent=1 // loop_pre_header
      _
    $region3: #{resnext_block_forward.1} parent=1 // loop_header
      %s17 = sphi 0, %s21
      %p18 = scmp.ge.s32.totalorder %s17, 4
      %s27 = sphi 0, %s29
      %s30 = sphi 0, %s27
      %s31 = sphi 0, %s30
      %s47 = sphi 0, %s31
      %s51 = sphi 0, %s51
      %s53 = sphi 0, %s51
      %s54 = sphi 0, %s53
      %s68 = sphi 0, %s54
      %s72 = sphi 0, %s72
      %s74 = sphi 0, %s72
      %s75 = sphi 0, %s74
      %s89 = sphi 0, %s75
      %s93 = sphi 0, %s93
      %s95 = sphi 0, %s93
      %s96 = sphi 0, %s95
      %s110 = sphi 0, %s96
      %s114 = sphi 0, %s114
      %s116 = sphi 0, %s114
      %s117 = sphi 0, %s116
      %s131 = sphi 0, %s117
      %s135 = sphi 0, %s135
      %s137 = sphi 0, %s135
      %s138 = sphi 0, %s137
      %s152 = sphi 0, %s138
      %s156 = sphi 0, %s156
      %s158 = sphi 0, %s156
      %s159 = sphi 0, %s158
      %s173 = sphi 0, %s159
      %s177 = sphi 0, %s177
      %s179 = sphi 0, %s177
      %s180 = sphi 0, %s179
      %s194 = sphi 0, %s180
      %s200 = sphi 0, %s202
      %s203 = sphi 0, %s200
      %s204 = sphi 0, %s203
      %s220 = sphi 0, %s204
    $region4: #{resnext_block_forward.1} parent=1 // loop_header_branch
      %20 = sbr.rel (%p18) target = $region8
    $region5: #{resnext_block_forward.1} parent=1 // loop_body
      %s22 = ssub.s32 %s17, 1
      %s23 = ssub.s32 %s17, 2
      %s24 = sadd.s32 %s17, 1
      %s25 = ssub.s32 %s17, %s24
      %p26 = scmp.eq.s32.totalorder %s25, 0
      %s28 = sadd.s32 %s27, 1
      %s29 = scalar_select %p26, %s27, %s28
      %p32 = pneg %p26
      %p33 = scmp.eq.s32.totalorder %s17, 1
      %p34 = por %p32, %p33
      %p35 = scmp.ne.s32.totalorder %s27, %s30
      %p36 = scmp.eq.s32.totalorder %s17, 0
      %p37 = por %p35, %p36
      %p38 = scmp.ne.s32.totalorder %s27, %s30
      %p39 = scmp.eq.s32.totalorder %s22, 1
      %p40 = por %p38, %p39
      %p41 = scmp.ne.s32.totalorder %s30, %s31
      %p42 = scmp.eq.s32.totalorder %s22, 0
      %p43 = por %p41, %p42
      %p44 = scmp.ne.s32.totalorder %s30, %s31
      %p45 = scmp.eq.s32.totalorder %s23, 1
      %p46 = por %p44, %p45
      %p48 = scmp.ne.s32.totalorder %s31, %s47
      %p49 = scmp.eq.s32.totalorder %s23, 0
      %p50 = por %p48, %p49
      %s52 = sadd.s32 %s51, 1
      %p55 = scmp.eq.s32.totalorder %s17, 1
      %p56 = scmp.ne.s32.totalorder %s51, %s53
      %p57 = scmp.eq.s32.totalorder %s17, 0
      %p58 = por %p56, %p57
      %p59 = scmp.ne.s32.totalorder %s51, %s53
      %p60 = scmp.eq.s32.totalorder %s22, 1
      %p61 = por %p59, %p60
      %p62 = scmp.ne.s32.totalorder %s53, %s54
      %p63 = scmp.eq.s32.totalorder %s22, 0
      %p64 = por %p62, %p63
      %p65 = scmp.ne.s32.totalorder %s53, %s54
      %p66 = scmp.eq.s32.totalorder %s23, 1
      %p67 = por %p65, %p66
      %p69 = scmp.ne.s32.totalorder %s54, %s68
      %p70 = scmp.eq.s32.totalorder %s23, 0
      %p71 = por %p69, %p70
      %s73 = sadd.s32 %s72, 1
      %p76 = scmp.eq.s32.totalorder %s17, 1
      %p77 = scmp.ne.s32.totalorder %s72, %s74
      %p78 = scmp.eq.s32.totalorder %s17, 0
      %p79 = por %p77, %p78
      %p80 = scmp.ne.s32.totalorder %s72, %s74
      %p81 = scmp.eq.s32.totalorder %s22, 1
      %p82 = por %p80, %p81
      %p83 = scmp.ne.s32.totalorder %s74, %s75
      %p84 = scmp.eq.s32.totalorder %s22, 0
      %p85 = por %p83, %p84
      %p86 = scmp.ne.s32.totalorder %s74, %s75
      %p87 = scmp.eq.s32.totalorder %s23, 1
      %p88 = por %p86, %p87
      %p90 = scmp.ne.s32.totalorder %s75, %s89
      %p91 = scmp.eq.s32.totalorder %s23, 0
      %p92 = por %p90, %p91
      %s94 = sadd.s32 %s93, 1
      %p97 = scmp.eq.s32.totalorder %s17, 1
      %p98 = scmp.ne.s32.totalorder %s93, %s95
      %p99 = scmp.eq.s32.totalorder %s17, 0
      %p100 = por %p98, %p99
      %p101 = scmp.ne.s32.totalorder %s93, %s95
      %p102 = scmp.eq.s32.totalorder %s22, 1
      %p103 = por %p101, %p102
      %p104 = scmp.ne.s32.totalorder %s95, %s96
      %p105 = scmp.eq.s32.totalorder %s22, 0
      %p106 = por %p104, %p105
      %p107 = scmp.ne.s32.totalorder %s95, %s96
      %p108 = scmp.eq.s32.totalorder %s23, 1
      %p109 = por %p107, %p108
      %p111 = scmp.ne.s32.totalorder %s96, %s110
      %p112 = scmp.eq.s32.totalorder %s23, 0
      %p113 = por %p111, %p112
      %s115 = sadd.s32 %s114, 1
      %p118 = scmp.eq.s32.totalorder %s17, 1
      %p119 = scmp.ne.s32.totalorder %s114, %s116
      %p120 = scmp.eq.s32.totalorder %s17, 0
      %p121 = por %p119, %p120
      %p122 = scmp.ne.s32.totalorder %s114, %s116
      %p123 = scmp.eq.s32.totalorder %s22, 1
      %p124 = por %p122, %p123
      %p125 = scmp.ne.s32.totalorder %s116, %s117
      %p126 = scmp.eq.s32.totalorder %s22, 0
      %p127 = por %p125, %p126
      %p128 = scmp.ne.s32.totalorder %s116, %s117
      %p129 = scmp.eq.s32.totalorder %s23, 1
      %p130 = por %p128, %p129
      %p132 = scmp.ne.s32.totalorder %s117, %s131
      %p133 = scmp.eq.s32.totalorder %s23, 0
      %p134 = por %p132, %p133
      %s136 = sadd.s32 %s135, 1
      %p139 = scmp.eq.s32.totalorder %s17, 1
      %p140 = scmp.ne.s32.totalorder %s135, %s137
      %p141 = scmp.eq.s32.totalorder %s17, 0
      %p142 = por %p140, %p141
      %p143 = scmp.ne.s32.totalorder %s135, %s137
      %p144 = scmp.eq.s32.totalorder %s22, 1
      %p145 = por %p143, %p144
      %p146 = scmp.ne.s32.totalorder %s137, %s138
      %p147 = scmp.eq.s32.totalorder %s22, 0
      %p148 = por %p146, %p147
      %p149 = scmp.ne.s32.totalorder %s137, %s138
      %p150 = scmp.eq.s32.totalorder %s23, 1
      %p151 = por %p149, %p150
      %p153 = scmp.ne.s32.totalorder %s138, %s152
      %p154 = scmp.eq.s32.totalorder %s23, 0
      %p155 = por %p153, %p154
      %s157 = sadd.s32 %s156, 1
      %p160 = scmp.eq.s32.totalorder %s17, 1
      %p161 = scmp.ne.s32.totalorder %s156, %s158
      %p162 = scmp.eq.s32.totalorder %s17, 0
      %p163 = por %p161, %p162
      %p164 = scmp.ne.s32.totalorder %s156, %s158
      %p165 = scmp.eq.s32.totalorder %s22, 1
      %p166 = por %p164, %p165
      %p167 = scmp.ne.s32.totalorder %s158, %s159
      %p168 = scmp.eq.s32.totalorder %s22, 0
      %p169 = por %p167, %p168
      %p170 = scmp.ne.s32.totalorder %s158, %s159
      %p171 = scmp.eq.s32.totalorder %s23, 1
      %p172 = por %p170, %p171
      %p174 = scmp.ne.s32.totalorder %s159, %s173
      %p175 = scmp.eq.s32.totalorder %s23, 0
      %p176 = por %p174, %p175
      %s178 = sadd.s32 %s177, 1
      %p181 = scmp.eq.s32.totalorder %s17, 1
      %p182 = scmp.ne.s32.totalorder %s177, %s179
      %p183 = scmp.eq.s32.totalorder %s17, 0
      %p184 = por %p182, %p183
      %p185 = scmp.ne.s32.totalorder %s177, %s179
      %p186 = scmp.eq.s32.totalorder %s22, 1
      %p187 = por %p185, %p186
      %p188 = scmp.ne.s32.totalorder %s179, %s180
      %p189 = scmp.eq.s32.totalorder %s22, 0
      %p190 = por %p188, %p189
      %p191 = scmp.ne.s32.totalorder %s179, %s180
      %p192 = scmp.eq.s32.totalorder %s23, 1
      %p193 = por %p191, %p192
      %p195 = scmp.ne.s32.totalorder %s180, %s194
      %p196 = scmp.eq.s32.totalorder %s23, 0
      %p197 = por %p195, %p196
      %s198 = ssub.s32 %s17, %s24
      %p199 = scmp.eq.s32.totalorder %s198, 0
      %s201 = sadd.s32 %s200, 1
      %s202 = scalar_select %p199, %s200, %s201
      %p205 = pneg %p199
      %p206 = scmp.eq.s32.totalorder %s17, 1
      %p207 = por %p205, %p206
      %p208 = scmp.ne.s32.totalorder %s200, %s203
      %p209 = scmp.eq.s32.totalorder %s17, 0
      %p210 = por %p208, %p209
      %p211 = scmp.ne.s32.totalorder %s200, %s203
      %p212 = scmp.eq.s32.totalorder %s22, 1
      %p213 = por %p211, %p212
      %p214 = scmp.ne.s32.totalorder %s203, %s204
      %p215 = scmp.eq.s32.totalorder %s22, 0
      %p216 = por %p214, %p215
      %p217 = scmp.ne.s32.totalorder %s203, %s204
      %p218 = scmp.eq.s32.totalorder %s23, 1
      %p219 = por %p217, %p218
      %p221 = scmp.ne.s32.totalorder %s204, %s220
      %p222 = scmp.eq.s32.totalorder %s23, 0
      %p223 = por %p221, %p222
      %p224 = scmp.le.s32.totalorder 1, %s17
      %p225 = scmp.lt.s32.totalorder %s17, 3
      %p226 = pnand %p224, %p225
      %p227 = pneg %p226
      // Predicated region
      $region9: #{resnext_block_forward.1} parent=5 // pred_check
        _
      $region10: #{resnext_block_forward.1} parent=5 // pred_check_branch
        %229 = sbr.rel (%p226) target = $region12
      $region11: #{resnext_block_forward.1} parent=5 // pred_region
        %s230 = ssub.s32 %s17, 1
        // Predicated region
        $region13: #{resnext_block_forward.1} parent=11 // pred_check
          %p231 = pneg %p64
        $region14: #{resnext_block_forward.1} parent=11 // pred_check_branch
          %233 = sbr.rel (%p231) target = $region16
        $region15: #{resnext_block_forward.1} parent=11 // pred_region
          _
        $region16: #{resnext_block_forward.1} parent=11 // pred_fallthru
          _
        // Predicated region
        $region17: #{resnext_block_forward.1} parent=11 // pred_check
          %p234 = pneg %p85
        $region18: #{resnext_block_forward.1} parent=11 // pred_check_branch
          %236 = sbr.rel (%p234) target = $region20
        $region19: #{resnext_block_forward.1} parent=11 // pred_region
          _
        $region20: #{resnext_block_forward.1} parent=11 // pred_fallthru
          _
        // Predicated region
        $region21: #{resnext_block_forward.1} parent=11 // pred_check
          %p237 = pneg %p106
        $region22: #{resnext_block_forward.1} parent=11 // pred_check_branch
          %239 = sbr.rel (%p237) target = $region24
        $region23: #{resnext_block_forward.1} parent=11 // pred_region
          _
        $region24: #{resnext_block_forward.1} parent=11 // pred_fallthru
          _
        // Predicated region
        $region25: #{resnext_block_forward.1} parent=11 // pred_check
          %p240 = pneg %p127
        $region26: #{resnext_block_forward.1} parent=11 // pred_check_branch
          %242 = sbr.rel (%p240) target = $region28
        $region27: #{resnext_block_forward.1} parent=11 // pred_region
          _
        $region28: #{resnext_block_forward.1} parent=11 // pred_fallthru
          _
        // Predicated region
        $region29: #{resnext_block_forward.1} parent=11 // pred_check
          %p243 = pneg %p148
        $region30: #{resnext_block_forward.1} parent=11 // pred_check_branch
          %245 = sbr.rel (%p243) target = $region32
        $region31: #{resnext_block_forward.1} parent=11 // pred_region
          _
        $region32: #{resnext_block_forward.1} parent=11 // pred_fallthru
          _
        // Predicated region
        $region33: #{resnext_block_forward.1} parent=11 // pred_check
          %p246 = pneg %p169
        $region34: #{resnext_block_forward.1} parent=11 // pred_check_branch
          %248 = sbr.rel (%p246) target = $region36
        $region35: #{resnext_block_forward.1} parent=11 // pred_region
          _
        $region36: #{resnext_block_forward.1} parent=11 // pred_fallthru
          _
        // Predicated region
        $region37: #{resnext_block_forward.1} parent=11 // pred_check
          %p249 = pneg %p190
        $region38: #{resnext_block_forward.1} parent=11 // pred_check_branch
          %251 = sbr.rel (%p249) target = $region40
        $region39: #{resnext_block_forward.1} parent=11 // pred_region
          _
        $region40: #{resnext_block_forward.1} parent=11 // pred_fallthru
          _
      $region12: #{resnext_block_forward.1} parent=5 // pred_fallthru
        _
      %p252 = scmp.lt.s32.totalorder %s17, 2
      // Predicated region
      $region41: #{resnext_block_forward.1} parent=5 // pred_check
        %p253 = pneg %p252
      $region42: #{resnext_block_forward.1} parent=5 // pred_check_branch
        %255 = sbr.rel (%p253) target = $region44
      $region43: #{resnext_block_forward.1} parent=5 // pred_region
        // Predicated region
        $region45: #{resnext_block_forward.1} parent=43 // pred_check
          %p256 = pneg %p37
        $region46: #{resnext_block_forward.1} parent=43 // pred_check_branch
          %258 = sbr.rel (%p256) target = $region48
        $region47: #{resnext_block_forward.1} parent=43 // pred_region
          %p259 = scmp.lt.s32.totalorder %s17, 1
          %s260 = scalar_select %p259, %s17, 1
          %s261 = smul.addr %s260, 32
          %s262 = smul.addr %s261, 4
          %s263 = scalar_lea.vmem %s0, %s262
        $region48: #{resnext_block_forward.1} parent=43 // pred_fallthru
          _
      $region44: #{resnext_block_forward.1} parent=5 // pred_fallthru
        _
      %p264 = scmp.le.s32.totalorder 1, %s17
      %p265 = scmp.lt.s32.totalorder %s17, 3
      %p266 = pnand %p264, %p265
      %p267 = pneg %p266
      // Predicated region
      $region49: #{resnext_block_forward.1} parent=5 // pred_check
        _
      $region50: #{resnext_block_forward.1} parent=5 // pred_check_branch
        %269 = sbr.rel (%p266) target = $region52
      $region51: #{resnext_block_forward.1} parent=5 // pred_region
        %s270 = ssub.s32 %s17, 1
        %p271 = scmp.lt.s32.totalorder %s22, 1
        %s272 = scalar_select %p271, %s22, 1
        %s273 = smul.addr %s272, 32
        %s274 = smul.addr %s273, 4
        %s275 = scalar_lea.vmem %s0, %s274
        %p276 = pneg %p43
        %p277 = pneg %p40
        %p278 = pneg %p64
        %p279 = pneg %p61
        %p280 = pneg %p85
        %p281 = pneg %p82
        %p282 = pneg %p106
        %p283 = pneg %p103
        %p284 = pneg %p127
        %p285 = pneg %p124
        %p286 = pneg %p148
        %p287 = pneg %p145
        %p288 = pneg %p169
        %p289 = pneg %p166
        %p290 = pneg %p190
        %p291 = pneg %p187
        %p292 = pneg %p216
        %p293 = pneg %p213
        %s294 = sand.u32 %s203, 1
        %s295 = scalar_lea.sflag [#allocation4], %s294
        %s296 = sand.u32 %s203, 1
        %s297 = smul.addr %s296, 64
        %s298 = scalar_lea.vmem [#allocation3], %s297
        %p299 = scmp.lt.s32.totalorder %s22, 1
        %s300 = scalar_select %p299, %s22, 1
        %s301 = smul.addr %s300, 32
        %s302 = smul.addr %s301, 4
        %s303 = scalar_lea.vmem %s0, %s302
        %v305 = vld [vmem:[%s1] sm:$0xf]
        %v306 = vld [vmem:[%s1 + $0x4] sm:$0xf]
        %v307 = vld [vmem:[%s2] sm:$0x1]
        %v308 = vld [vmem:[%s4] sm:$0x1]
        %v309 = vld [vmem:[%s5] sm:$0xf]
        %v310 = vld [vmem:[%s7] sm:$0x1]
        %v311 = vld [vmem:[%s6] sm:$0xf]
        %v312 = vld [vmem:[%s6 + $0x4] sm:$0xf]
        %vm313 = vcmask 60416
        %314 = vst.msk [vmem:[#allocation2] sm:$0xf] %vm313, 0
        %315 = vst.msk [vmem:[#allocation2 + $0x4] sm:$0xf] %vm313, 0
        %vm316 = vcmask 57344
        %317 = vst.msk [vmem:[#allocation2 + $0x8] sm:$0x1] %vm316, 0
        %s318 = scalar_lea.vmem [#allocation2], 204
        %319 = vst.msk [vmem:[%s318] sm:$0xf] %vm313, 0
        %320 = vst.msk [vmem:[%s318 + $0x4] sm:$0xf] %vm313, 0
        %321 = vst.msk [vmem:[%s318 + $0x8] sm:$0x1] %vm316, 0
        %v322 = vld [vmem:[%s303] sm:$0xf]
        %v323 = vld [vmem:[%s303 + $0x4] sm:$0xf]
        %v324 = vld [vmem:[%s303 + $0x8] sm:$0xf]
        %v325 = vld [vmem:[%s303 + $0xc] sm:$0xf]
        %v326 = vld [vmem:[%s303 + $0x10] sm:$0xf]
        %v327 = vld [vmem:[%s303 + $0x14] sm:$0xf]
        %v328 = vld [vmem:[%s303 + $0x18] sm:$0xf]
        %v329 = vld [vmem:[%s303 + $0x1c] sm:$0xf]
        %v330 = vld [vmem:[%s303 + $0x20] sm:$0xf]
        %v331 = vld [vmem:[%s303 + $0x24] sm:$0xf]
        %v332 = vld [vmem:[%s303 + $0x28] sm:$0xf]
        %v333 = vld [vmem:[%s303 + $0x2c] sm:$0xf]
        %v334 = vld [vmem:[%s303 + $0x30] sm:$0xf]
        %v335 = vld [vmem:[%s303 + $0x34] sm:$0xf]
        %v336 = vld [vmem:[%s303 + $0x38] sm:$0xf]
        %v337 = vld [vmem:[%s303 + $0x3c] sm:$0xf]
        %v338 = vld [vmem:[%s303 + $0x40] sm:$0xf]
        %v339 = vld [vmem:[%s303 + $0x44] sm:$0xf]
        %v340 = vld [vmem:[%s303 + $0x48] sm:$0xf]
        %v341 = vld [vmem:[%s303 + $0x4c] sm:$0xf]
        %v342 = vld [vmem:[%s303 + $0x50] sm:$0xf]
        %v343 = vld [vmem:[%s303 + $0x54] sm:$0xf]
        %v344 = vld [vmem:[%s303 + $0x58] sm:$0xf]
        %v345 = vld [vmem:[%s303 + $0x5c] sm:$0xf]
        %v346 = vld [vmem:[%s303 + $0x60] sm:$0xf]
        %v347 = vld [vmem:[%s303 + $0x64] sm:$0xf]
        %v348 = vld [vmem:[%s303 + $0x68] sm:$0xf]
        %v349 = vld [vmem:[%s303 + $0x6c] sm:$0xf]
        %v350 = vld [vmem:[%s303 + $0x70] sm:$0xf]
        %v351 = vld [vmem:[%s303 + $0x74] sm:$0xf]
        %v352 = vld [vmem:[%s303 + $0x78] sm:$0xf]
        %v353 = vld [vmem:[%s303 + $0x7c] sm:$0xf]
        %v355 = vperm.slane %v307, 0
        %v389 = vunpack.c.l.b16 %v322
        %v390 = vunpack.c.l.b16 %v323
        %v391 = vunpack.c.l.b16 %v324
        %v392 = vunpack.c.l.b16 %v325
        %v393 = vunpack.c.l.b16 %v326
        %v394 = vunpack.c.l.b16 %v327
        %v395 = vunpack.c.l.b16 %v328
        %v396 = vunpack.c.l.b16 %v329
        %v397 = vunpack.c.l.b16 %v330
        %v398 = vunpack.c.l.b16 %v331
        %v399 = vunpack.c.l.b16 %v332
        %v400 = vunpack.c.l.b16 %v333
        %v401 = vunpack.c.l.b16 %v334
        %v402 = vunpack.c.l.b16 %v335
        %v403 = vunpack.c.l.b16 %v336
        %v404 = vunpack.c.l.b16 %v337
        %v405 = vunpack.c.l.b16 %v338
        %v406 = vunpack.c.l.b16 %v339
        %v407 = vunpack.c.l.b16 %v340
        %v408 = vunpack.c.l.b16 %v341
        %v409 = vunpack.c.l.b16 %v342
        %v410 = vunpack.c.l.b16 %v343
        %v411 = vunpack.c.l.b16 %v344
        %v412 = vunpack.c.l.b16 %v345
        %v413 = vunpack.c.l.b16 %v346
        %v414 = vunpack.c.l.b16 %v347
        %v415 = vunpack.c.l.b16 %v348
        %v416 = vunpack.c.l.b16 %v349
        %v417 = vunpack.c.l.b16 %v350
        %v418 = vunpack.c.l.b16 %v351
        %v419 = vunpack.c.l.b16 %v352
        %v420 = vunpack.c.l.b16 %v353
        %v421 = vpack.c.b16 %v390, %v389
        %v422 = vpack.c.b16 %v392, %v391
        %v423 = vpack.c.b16 %v394, %v393
        %v424 = vpack.c.b16 %v396, %v395
        %v425 = vpack.c.b16 %v398, %v397
        %v426 = vpack.c.b16 %v400, %v399
        %v427 = vpack.c.b16 %v402, %v401
        %v428 = vpack.c.b16 %v404, %v403
        %v429 = vpack.c.b16 %v406, %v405
        %v430 = vpack.c.b16 %v408, %v407
        %v431 = vpack.c.b16 %v410, %v409
        %v432 = vpack.c.b16 %v412, %v411
        %v433 = vpack.c.b16 %v414, %v413
        %v434 = vpack.c.b16 %v416, %v415
        %v435 = vpack.c.b16 %v418, %v417
        %v436 = vpack.c.b16 %v420, %v419
        %v439 = vunpack.c.l.b16 %v305
        %v440 = vunpack.c.l.b16 %v306
        %v441 = vpack.c.b16 %v440, %v439
        %vm443 = vcmask 130048
        %v445 = vsel %vm443, %v421, 0
        %v448 = vsel %vm443, %v422, 0
        %v451 = vsel %vm443, %v423, 0
        %v454 = vsel %vm443, %v424, 0
        %v457 = vsel %vm443, %v425, 0
        %v460 = vsel %vm443, %v426, 0
        %v463 = vsel %vm443, %v427, 0
        %v466 = vsel %vm443, %v428, 0
        %v469 = vsel %vm443, %v429, 0
        %v472 = vsel %vm443, %v430, 0
        %v475 = vsel %vm443, %v431, 0
        %v478 = vsel %vm443, %v432, 0
        %v481 = vsel %vm443, %v433, 0
        %v484 = vsel %vm443, %v434, 0
        %v487 = vsel %vm443, %v435, 0
        %v490 = vsel %vm443, %v436, 0
        %492 = vmatpush.bf16.msra.mxu0 0
        %493 = vmatpush.bf16.msra.mxu0 0
        %494 = vmatpush.bf16.msra.mxu0 0
        %495 = vmatpush.bf16.msra.mxu0 0
        %496 = vmatpush.bf16.msra.mxu0 0
        %497 = vmatpush.bf16.msra.mxu0 0
        %498 = vmatpush.bf16.msra.mxu0 0
        %499 = vmatpush.bf16.msra.mxu0 %v441
        %500 = vmatmul.bf16.gmra.mxu0 %v445
        %v501 = vpop.f32.mrf.mxu0
        %v502 = vadd.f32 %v355, %v501
        %v503 = vpop.f32.mrf.mxu0
        %v504 = vadd.f32 %v355, %v503
        %505 = vmatmul.bf16.gmra.mxu0 %v448
        %v506 = vpop.f32.mrf.mxu0
        %v507 = vadd.f32 %v355, %v506
        %v508 = vpop.f32.mrf.mxu0
        %v509 = vadd.f32 %v355, %v508
        %510 = vmatmul.bf16.gmra.mxu0 %v451
        %v511 = vpop.f32.mrf.mxu0
        %v512 = vadd.f32 %v355, %v511
        %v513 = vpop.f32.mrf.mxu0
        %v514 = vadd.f32 %v355, %v513
        %515 = vmatmul.bf16.gmra.mxu0 %v454
        %v516 = vpop.f32.mrf.mxu0
        %v517 = vadd.f32 %v355, %v516
        %v518 = vpop.f32.mrf.mxu0
        %v519 = vadd.f32 %v355, %v518
        %520 = vmatmul.bf16.gmra.mxu0 %v457
        %v521 = vpop.f32.mrf.mxu0
        %v522 = vadd.f32 %v355, %v521
        %v523 = vpop.f32.mrf.mxu0
        %v524 = vadd.f32 %v355, %v523
        %525 = vmatmul.bf16.gmra.mxu0 %v460
        %v526 = vpop.f32.mrf.mxu0
        %v527 = vadd.f32 %v355, %v526
        %v528 = vpop.f32.mrf.mxu0
        %v529 = vadd.f32 %v355, %v528
        %530 = vmatmul.bf16.gmra.mxu0 %v463
        %v531 = vpop.f32.mrf.mxu0
        %v532 = vadd.f32 %v355, %v531
        %v533 = vpop.f32.mrf.mxu0
        %v534 = vadd.f32 %v355, %v533
        %535 = vmatmul.bf16.gmra.mxu0 %v466
        %v536 = vpop.f32.mrf.mxu0
        %v537 = vadd.f32 %v355, %v536
        %v538 = vpop.f32.mrf.mxu0
        %v539 = vadd.f32 %v355, %v538
        %540 = vmatmul.bf16.gmra.mxu0 %v469
        %v541 = vpop.f32.mrf.mxu0
        %v542 = vadd.f32 %v355, %v541
        %v543 = vpop.f32.mrf.mxu0
        %v544 = vadd.f32 %v355, %v543
        %545 = vmatmul.bf16.gmra.mxu0 %v472
        %v546 = vpop.f32.mrf.mxu0
        %v547 = vadd.f32 %v355, %v546
        %v548 = vpop.f32.mrf.mxu0
        %v549 = vadd.f32 %v355, %v548
        %550 = vmatmul.bf16.gmra.mxu0 %v475
        %v551 = vpop.f32.mrf.mxu0
        %v552 = vadd.f32 %v355, %v551
        %v553 = vpop.f32.mrf.mxu0
        %v554 = vadd.f32 %v355, %v553
        %555 = vmatmul.bf16.gmra.mxu0 %v478
        %v556 = vpop.f32.mrf.mxu0
        %v557 = vadd.f32 %v355, %v556
        %v558 = vpop.f32.mrf.mxu0
        %v559 = vadd.f32 %v355, %v558
        %560 = vmatmul.bf16.gmra.mxu0 %v481
        %v561 = vpop.f32.mrf.mxu0
        %v562 = vadd.f32 %v355, %v561
        %v563 = vpop.f32.mrf.mxu0
        %v564 = vadd.f32 %v355, %v563
        %565 = vmatmul.bf16.gmra.mxu0 %v484
        %v566 = vpop.f32.mrf.mxu0
        %v567 = vadd.f32 %v355, %v566
        %v568 = vpop.f32.mrf.mxu0
        %v569 = vadd.f32 %v355, %v568
        %570 = vmatmul.bf16.gmra.mxu0 %v487
        %v571 = vpop.f32.mrf.mxu0
        %v572 = vadd.f32 %v355, %v571
        %v573 = vpop.f32.mrf.mxu0
        %v574 = vadd.f32 %v355, %v573
        %575 = vmatmul.bf16.gmra.mxu0 %v490
        %v576 = vpop.f32.mrf.mxu0
        %v577 = vadd.f32 %v355, %v576
        %v578 = vpop.f32.mrf.mxu0
        %v579 = vadd.f32 %v355, %v578
        %580 = vdwg.mxu0
        %v581 = vmax.f32 %v502, 0.0
        %v582 = vmax.f32 %v504, 0.0
        %v583 = vmax.f32 %v507, 0.0
        %v584 = vmax.f32 %v509, 0.0
        %v585 = vmax.f32 %v512, 0.0
        %v586 = vmax.f32 %v514, 0.0
        %v587 = vmax.f32 %v517, 0.0
        %v588 = vmax.f32 %v519, 0.0
        %v589 = vmax.f32 %v522, 0.0
        %v590 = vmax.f32 %v524, 0.0
        %v591 = vmax.f32 %v527, 0.0
        %v592 = vmax.f32 %v529, 0.0
        %v593 = vmax.f32 %v532, 0.0
        %v594 = vmax.f32 %v534, 0.0
        %v595 = vmax.f32 %v537, 0.0
        %v596 = vmax.f32 %v539, 0.0
        %v597 = vmax.f32 %v542, 0.0
        %v598 = vmax.f32 %v544, 0.0
        %v599 = vmax.f32 %v547, 0.0
        %v600 = vmax.f32 %v549, 0.0
        %v601 = vmax.f32 %v552, 0.0
        %v602 = vmax.f32 %v554, 0.0
        %v603 = vmax.f32 %v557, 0.0
        %v604 = vmax.f32 %v559, 0.0
        %v605 = vmax.f32 %v562, 0.0
        %v606 = vmax.f32 %v564, 0.0
        %v607 = vmax.f32 %v567, 0.0
        %v608 = vmax.f32 %v569, 0.0
        %v609 = vmax.f32 %v572, 0.0
        %v610 = vmax.f32 %v574, 0.0
        %v611 = vmax.f32 %v577, 0.0
        %v612 = vmax.f32 %v579, 0.0
        %vm645 = vcmask 1040384
        %v646 = vrot.slane %v581, 7
        %v647 = vrot.slane %v582, 7
        %v648 = vsel %vm645, %v646, %v647
        %v649 = vrot.slane %v583, 7
        %v650 = vrot.slane %v584, 7
        %v651 = vsel %vm645, %v649, %v650
        %v652 = vrot.slane %v585, 7
        %v653 = vrot.slane %v586, 7
        %v654 = vsel %vm645, %v652, %v653
        %v655 = vrot.slane %v587, 7
        %v656 = vrot.slane %v588, 7
        %v657 = vsel %vm645, %v655, %v656
        %v658 = vrot.slane %v589, 7
        %v659 = vrot.slane %v590, 7
        %v660 = vsel %vm645, %v658, %v659
        %v661 = vrot.slane %v591, 7
        %v662 = vrot.slane %v592, 7
        %v663 = vsel %vm645, %v661, %v662
        %v664 = vrot.slane %v593, 7
        %v665 = vrot.slane %v594, 7
        %v666 = vsel %vm645, %v664, %v665
        %v667 = vrot.slane %v595, 7
        %v668 = vrot.slane %v596, 7
        %v669 = vsel %vm645, %v667, %v668
        %v670 = vrot.slane %v597, 7
        %v671 = vrot.slane %v598, 7
        %v672 = vsel %vm645, %v670, %v671
        %v673 = vrot.slane %v599, 7
        %v674 = vrot.slane %v600, 7
        %v675 = vsel %vm645, %v673, %v674
        %v676 = vrot.slane %v601, 7
        %v677 = vrot.slane %v602, 7
        %v678 = vsel %vm645, %v676, %v677
        %v679 = vrot.slane %v603, 7
        %v680 = vrot.slane %v604, 7
        %v681 = vsel %vm645, %v679, %v680
        %v682 = vrot.slane %v605, 7
        %v683 = vrot.slane %v606, 7
        %v684 = vsel %vm645, %v682, %v683
        %v685 = vrot.slane %v607, 7
        %v686 = vrot.slane %v608, 7
        %v687 = vsel %vm645, %v685, %v686
        %v688 = vrot.slane %v609, 7
        %v689 = vrot.slane %v610, 7
        %v690 = vsel %vm645, %v688, %v689
        %v691 = vrot.slane %v611, 7
        %v692 = vrot.slane %v612, 7
        %v693 = vsel %vm645, %v691, %v692
        %v742 = vsel %vm645, 0.0, %v646
        %v743 = vsel %vm645, 0.0, %v649
        %v744 = vsel %vm645, 0.0, %v652
        %v745 = vsel %vm645, 0.0, %v655
        %v746 = vsel %vm645, 0.0, %v658
        %v747 = vsel %vm645, 0.0, %v661
        %v748 = vsel %vm645, 0.0, %v664
        %v749 = vsel %vm645, 0.0, %v667
        %v750 = vsel %vm645, 0.0, %v670
        %v751 = vsel %vm645, 0.0, %v673
        %v752 = vsel %vm645, 0.0, %v676
        %v753 = vsel %vm645, 0.0, %v679
        %v754 = vsel %vm645, 0.0, %v682
        %v755 = vsel %vm645, 0.0, %v685
        %v756 = vsel %vm645, 0.0, %v688
        %v757 = vsel %vm645, 0.0, %v691
        %v758 = vsel %vm645, %v647, 0.0
        %v759 = vsel %vm645, %v650, 0.0
        %v760 = vsel %vm645, %v653, 0.0
        %v761 = vsel %vm645, %v656, 0.0
        %v762 = vsel %vm645, %v659, 0.0
        %v763 = vsel %vm645, %v662, 0.0
        %v764 = vsel %vm645, %v665, 0.0
        %v765 = vsel %vm645, %v668, 0.0
        %v766 = vsel %vm645, %v671, 0.0
        %v767 = vsel %vm645, %v674, 0.0
        %v768 = vsel %vm645, %v677, 0.0
        %v769 = vsel %vm645, %v680, 0.0
        %v770 = vsel %vm645, %v683, 0.0
        %v771 = vsel %vm645, %v686, 0.0
        %v772 = vsel %vm645, %v689, 0.0
        %v773 = vsel %vm645, %v692, 0.0
        %v774 = vpack.c.bf16 %v742, %v742
        %v775 = vpack.c.bf16 %v648, %v648
        %v776 = vpack.c.bf16 %v758, %v758
        %v777 = vpack.c.bf16 %v743, %v743
        %v778 = vpack.c.bf16 %v651, %v651
        %v779 = vpack.c.bf16 %v759, %v759
        %v780 = vpack.c.bf16 %v744, %v744
        %v781 = vpack.c.bf16 %v654, %v654
        %v782 = vpack.c.bf16 %v760, %v760
        %v783 = vpack.c.bf16 %v745, %v745
        %v784 = vpack.c.bf16 %v657, %v657
        %v785 = vpack.c.bf16 %v761, %v761
        %v786 = vpack.c.bf16 %v746, %v746
        %v787 = vpack.c.bf16 %v660, %v660
        %v788 = vpack.c.bf16 %v762, %v762
        %v789 = vpack.c.bf16 %v747, %v747
        %v790 = vpack.c.bf16 %v663, %v663
        %v791 = vpack.c.bf16 %v763, %v763
        %v792 = vpack.c.bf16 %v748, %v748
        %v793 = vpack.c.bf16 %v666, %v666
        %v794 = vpack.c.bf16 %v764, %v764
        %v795 = vpack.c.bf16 %v749, %v749
        %v796 = vpack.c.bf16 %v669, %v669
        %v797 = vpack.c.bf16 %v765, %v765
        %v798 = vpack.c.bf16 %v750, %v750
        %v799 = vpack.c.bf16 %v672, %v672
        %v800 = vpack.c.bf16 %v766, %v766
        %v801 = vpack.c.bf16 %v751, %v751
        %v802 = vpack.c.bf16 %v675, %v675
        %v803 = vpack.c.bf16 %v767, %v767
        %v804 = vpack.c.bf16 %v752, %v752
        %v805 = vpack.c.bf16 %v678, %v678
        %v806 = vpack.c.bf16 %v768, %v768
        %v807 = vpack.c.bf16 %v753, %v753
        %v808 = vpack.c.bf16 %v681, %v681
        %v809 = vpack.c.bf16 %v769, %v769
        %v810 = vpack.c.bf16 %v754, %v754
        %v811 = vpack.c.bf16 %v684, %v684
        %v812 = vpack.c.bf16 %v770, %v770
        %v813 = vpack.c.bf16 %v755, %v755
        %v814 = vpack.c.bf16 %v687, %v687
        %v815 = vpack.c.bf16 %v771, %v771
        %v816 = vpack.c.bf16 %v756, %v756
        %v817 = vpack.c.bf16 %v690, %v690
        %v818 = vpack.c.bf16 %v772, %v772
        %v819 = vpack.c.bf16 %v757, %v757
        %v820 = vpack.c.bf16 %v693, %v693
        %v821 = vpack.c.bf16 %v773, %v773
        %s822 = scalar_lea.vmem [#allocation2], 12
        %823 = vst.msk [vmem:[%s822] sm:$0xf] %vm313, %v774
        %824 = vst.msk [vmem:[%s822 + $0x4] sm:$0xf] %vm313, %v775
        %825 = vst.msk [vmem:[%s822 + $0x8] sm:$0x1] %vm316, %v776
        %826 = vst.msk [vmem:[%s822 + $0xc] sm:$0xf] %vm313, %v777
        %827 = vst.msk [vmem:[%s822 + $0x10] sm:$0xf] %vm313, %v778
        %828 = vst.msk [vmem:[%s822 + $0x14] sm:$0x1] %vm316, %v779
        %829 = vst.msk [vmem:[%s822 + $0x18] sm:$0xf] %vm313, %v780
        %830 = vst.msk [vmem:[%s822 + $0x1c] sm:$0xf] %vm313, %v781
        %831 = vst.msk [vmem:[%s822 + $0x20] sm:$0x1] %vm316, %v782
        %832 = vst.msk [vmem:[%s822 + $0x24] sm:$0xf] %vm313, %v783
        %833 = vst.msk [vmem:[%s822 + $0x28] sm:$0xf] %vm313, %v784
        %834 = vst.msk [vmem:[%s822 + $0x2c] sm:$0x1] %vm316, %v785
        %835 = vst.msk [vmem:[%s822 + $0x30] sm:$0xf] %vm313, %v786
        %836 = vst.msk [vmem:[%s822 + $0x34] sm:$0xf] %vm313, %v787
        %837 = vst.msk [vmem:[%s822 + $0x38] sm:$0x1] %vm316, %v788
        %838 = vst.msk [vmem:[%s822 + $0x3c] sm:$0xf] %vm313, %v789
        %839 = vst.msk [vmem:[%s822 + $0x40] sm:$0xf] %vm313, %v790
        %840 = vst.msk [vmem:[%s822 + $0x44] sm:$0x1] %vm316, %v791
        %841 = vst.msk [vmem:[%s822 + $0x48] sm:$0xf] %vm313, %v792
        %842 = vst.msk [vmem:[%s822 + $0x4c] sm:$0xf] %vm313, %v793
        %843 = vst.msk [vmem:[%s822 + $0x50] sm:$0x1] %vm316, %v794
        %844 = vst.msk [vmem:[%s822 + $0x54] sm:$0xf] %vm313, %v795
        %845 = vst.msk [vmem:[%s822 + $0x58] sm:$0xf] %vm313, %v796
        %846 = vst.msk [vmem:[%s822 + $0x5c] sm:$0x1] %vm316, %v797
        %847 = vst.msk [vmem:[%s822 + $0x60] sm:$0xf] %vm313, %v798
        %848 = vst.msk [vmem:[%s822 + $0x64] sm:$0xf] %vm313, %v799
        %849 = vst.msk [vmem:[%s822 + $0x68] sm:$0x1] %vm316, %v800
        %850 = vst.msk [vmem:[%s822 + $0x6c] sm:$0xf] %vm313, %v801
        %851 = vst.msk [vmem:[%s822 + $0x70] sm:$0xf] %vm313, %v802
        %852 = vst.msk [vmem:[%s822 + $0x74] sm:$0x1] %vm316, %v803
        %853 = vst.msk [vmem:[%s822 + $0x78] sm:$0xf] %vm313, %v804
        %854 = vst.msk [vmem:[%s822 + $0x7c] sm:$0xf] %vm313, %v805
        %855 = vst.msk [vmem:[%s822 + $0x80] sm:$0x1] %vm316, %v806
        %856 = vst.msk [vmem:[%s822 + $0x84] sm:$0xf] %vm313, %v807
        %857 = vst.msk [vmem:[%s822 + $0x88] sm:$0xf] %vm313, %v808
        %858 = vst.msk [vmem:[%s822 + $0x8c] sm:$0x1] %vm316, %v809
        %859 = vst.msk [vmem:[%s822 + $0x90] sm:$0xf] %vm313, %v810
        %860 = vst.msk [vmem:[%s822 + $0x94] sm:$0xf] %vm313, %v811
        %861 = vst.msk [vmem:[%s822 + $0x98] sm:$0x1] %vm316, %v812
        %862 = vst.msk [vmem:[%s822 + $0x9c] sm:$0xf] %vm313, %v813
        %863 = vst.msk [vmem:[%s822 + $0xa0] sm:$0xf] %vm313, %v814
        %864 = vst.msk [vmem:[%s822 + $0xa4] sm:$0x1] %vm316, %v815
        %865 = vst.msk [vmem:[%s822 + $0xa8] sm:$0xf] %vm313, %v816
        %866 = vst.msk [vmem:[%s822 + $0xac] sm:$0xf] %vm313, %v817
        %867 = vst.msk [vmem:[%s822 + $0xb0] sm:$0x1] %vm316, %v818
        %868 = vst.msk [vmem:[%s822 + $0xb4] sm:$0xf] %vm313, %v819
        %869 = vst.msk [vmem:[%s822 + $0xb8] sm:$0xf] %vm313, %v820
        %870 = vst.msk [vmem:[%s822 + $0xbc] sm:$0x1] %vm316, %v821
        %v871 = vld [vmem:[#allocation2] sm:$0xf]
        %v872 = vld [vmem:[#allocation2 + $0xc] sm:$0xf]
        %v873 = vld [vmem:[#allocation2 + $0x18] sm:$0xf]
        %v874 = vld [vmem:[#allocation2 + $0x24] sm:$0xf]
        %v875 = vld [vmem:[#allocation2 + $0x30] sm:$0xf]
        %v876 = vld [vmem:[#allocation2 + $0x3c] sm:$0xf]
        %v877 = vld [vmem:[#allocation2 + $0x48] sm:$0xf]
        %v878 = vld [vmem:[#allocation2 + $0x54] sm:$0xf]
        %v879 = vld [vmem:[%s3] sm:$0xf]
        %v880 = vld [vmem:[#allocation2 + $0x4] sm:$0xf]
        %v881 = vld [vmem:[#allocation2 + $0x8] sm:$0x1]
        %v882 = vld [vmem:[#allocation2 + $0x10] sm:$0xf]
        %v883 = vld [vmem:[#allocation2 + $0x14] sm:$0x1]
        %v884 = vld [vmem:[#allocation2 + $0x1c] sm:$0xf]
        %v885 = vld [vmem:[#allocation2 + $0x20] sm:$0x1]
        %v886 = vld [vmem:[#allocation2 + $0x28] sm:$0xf]
        %v887 = vld [vmem:[#allocation2 + $0x2c] sm:$0x1]
        %v888 = vld [vmem:[#allocation2 + $0x34] sm:$0xf]
        %v889 = vld [vmem:[#allocation2 + $0x38] sm:$0x1]
        %v890 = vld [vmem:[#allocation2 + $0x40] sm:$0xf]
        %v891 = vld [vmem:[#allocation2 + $0x44] sm:$0x1]
        %v892 = vld [vmem:[#allocation2 + $0x4c] sm:$0xf]
        %v893 = vld [vmem:[#allocation2 + $0x50] sm:$0x1]
        %v894 = vld [vmem:[#allocation2 + $0x58] sm:$0xf]
        %v895 = vld [vmem:[#allocation2 + $0x5c] sm:$0x1]
        %vm896 = vsmask.f32 3328
        %vm897 = vsmask.f32 7440
        %vm898 = vmor %vm896, %vm897
        %v900 = vshrl.u32 %v880, 16
        %v902 = vrot.slane %v900, 4
        %v903 = vshll.u32 %v880, 16
        %v905 = vrot.slane %v903, 5
        %v906 = vor.u32 %v902, %v905
        %v907 = vrot.slane %v906, 4
        %v909 = vshll.u32 %v881, 16
        %v911 = vrot.slane %v909, 5
        %v912 = vsel %vm898, %v907, %v911
        %v914 = vshrl.u32 %v882, 16
        %v916 = vrot.slane %v914, 4
        %v917 = vshll.u32 %v882, 16
        %v919 = vrot.slane %v917, 5
        %v920 = vor.u32 %v916, %v919
        %v921 = vrot.slane %v920, 4
        %v923 = vshll.u32 %v883, 16
        %v925 = vrot.slane %v923, 5
        %v926 = vsel %vm898, %v921, %v925
        %v928 = vshrl.u32 %v884, 16
        %v930 = vrot.slane %v928, 4
        %v931 = vshll.u32 %v884, 16
        %v933 = vrot.slane %v931, 5
        %v934 = vor.u32 %v930, %v933
        %v935 = vrot.slane %v934, 4
        %v937 = vshll.u32 %v885, 16
        %v939 = vrot.slane %v937, 5
        %v940 = vsel %vm898, %v935, %v939
        %v942 = vshrl.u32 %v886, 16
        %v944 = vrot.slane %v942, 4
        %v945 = vshll.u32 %v886, 16
        %v947 = vrot.slane %v945, 5
        %v948 = vor.u32 %v944, %v947
        %v949 = vrot.slane %v948, 4
        %v951 = vshll.u32 %v887, 16
        %v953 = vrot.slane %v951, 5
        %v954 = vsel %vm898, %v949, %v953
        %v956 = vshrl.u32 %v888, 16
        %v958 = vrot.slane %v956, 4
        %v959 = vshll.u32 %v888, 16
        %v961 = vrot.slane %v959, 5
        %v962 = vor.u32 %v958, %v961
        %v963 = vrot.slane %v962, 4
        %v965 = vshll.u32 %v889, 16
        %v967 = vrot.slane %v965, 5
        %v968 = vsel %vm898, %v963, %v967
        %v970 = vshrl.u32 %v890, 16
        %v972 = vrot.slane %v970, 4
        %v973 = vshll.u32 %v890, 16
        %v975 = vrot.slane %v973, 5
        %v976 = vor.u32 %v972, %v975
        %v977 = vrot.slane %v976, 4
        %v979 = vshll.u32 %v891, 16
        %v981 = vrot.slane %v979, 5
        %v982 = vsel %vm898, %v977, %v981
        %v984 = vshrl.u32 %v892, 16
        %v986 = vrot.slane %v984, 4
        %v987 = vshll.u32 %v892, 16
        %v989 = vrot.slane %v987, 5
        %v990 = vor.u32 %v986, %v989
        %v991 = vrot.slane %v990, 4
        %v993 = vshll.u32 %v893, 16
        %v995 = vrot.slane %v993, 5
        %v996 = vsel %vm898, %v991, %v995
        %v998 = vshrl.u32 %v894, 16
        %v1000 = vrot.slane %v998, 4
        %v1001 = vshll.u32 %v894, 16
        %v1003 = vrot.slane %v1001, 5
        %v1004 = vor.u32 %v1000, %v1003
        %v1005 = vrot.slane %v1004, 4
        %v1007 = vshll.u32 %v895, 16
        %v1009 = vrot.slane %v1007, 5
        %v1010 = vsel %vm898, %v1005, %v1009
        %s1011 = scalar_lea.vmem %s3, 4
        %v1012 = vld [vmem:[%s1011] sm:$0xf]
        %v1013 = vunpack.c.l.b16 %v912
        %v1014 = vunpack.c.l.b16 %v926
        %v1015 = vunpack.c.l.b16 %v940
        %v1016 = vunpack.c.l.b16 %v954
        %v1017 = vunpack.c.l.b16 %v968
        %v1018 = vunpack.c.l.b16 %v982
        %v1019 = vunpack.c.l.b16 %v996
        %v1020 = vunpack.c.l.b16 %v1010
        %v1021 = vpack.c.b16 %v1014, %v1013
        %v1022 = vpack.c.b16 %v1016, %v1015
        %v1023 = vpack.c.b16 %v1018, %v1017
        %v1024 = vpack.c.b16 %v1020, %v1019
        %vm1025 = vcmask 64512
        %v1027 = vsel %vm1025, %v1021, 0
        %v1030 = vsel %vm1025, %v1022, 0
        %v1033 = vsel %vm1025, %v1023, 0
        %v1036 = vsel %vm1025, %v1024, 0
        %vm1038 = vcmask 1043456
        %v1040 = vsel %vm1038, %v1012, 0
        %1042 = vmatpush.bf16.msra.mxu0 0
        %1043 = vmatpush.bf16.msra.mxu0 0
        %1044 = vmatpush.bf16.msra.mxu0 0
        %1045 = vmatpush.bf16.msra.mxu0 0
        %1046 = vmatpush.bf16.msra.mxu0 0
        %1047 = vmatpush.bf16.msra.mxu0 0
        %1048 = vmatpush.bf16.msra.mxu0 0
        %1049 = vmatpush.bf16.msra.mxu0 %v1040
        %1050 = vmatmul.bf16.gmra.mxu0 %v1027
        %v1051 = vpop.f32.mrf.mxu0
        %v1052 = vadd.f32 0.0, %v1051
        %v1053 = vpop.f32.mrf.mxu0
        %v1054 = vadd.f32 0.0, %v1053
        %1055 = vmatmul.bf16.gmra.mxu0 %v1030
        %v1056 = vpop.f32.mrf.mxu0
        %v1057 = vadd.f32 0.0, %v1056
        %v1058 = vpop.f32.mrf.mxu0
        %v1059 = vadd.f32 0.0, %v1058
        %1060 = vmatmul.bf16.gmra.mxu0 %v1033
        %v1061 = vpop.f32.mrf.mxu0
        %v1062 = vadd.f32 0.0, %v1061
        %v1063 = vpop.f32.mrf.mxu0
        %v1064 = vadd.f32 0.0, %v1063
        %1065 = vmatmul.bf16.gmra.mxu0 %v1036
        %v1066 = vpop.f32.mrf.mxu0
        %v1067 = vadd.f32 0.0, %v1066
        %v1068 = vpop.f32.mrf.mxu0
        %v1069 = vadd.f32 0.0, %v1068
        %1070 = vdwg.mxu0
        %v1079 = vunpack.c.l.b16 %v871
        %v1080 = vunpack.c.l.b16 %v872
        %v1081 = vunpack.c.l.b16 %v873
        %v1082 = vunpack.c.l.b16 %v874
        %v1083 = vunpack.c.l.b16 %v875
        %v1084 = vunpack.c.l.b16 %v876
        %v1085 = vunpack.c.l.b16 %v877
        %v1086 = vunpack.c.l.b16 %v878
        %v1087 = vpack.c.b16 %v1080, %v1079
        %v1088 = vpack.c.b16 %v1082, %v1081
        %v1089 = vpack.c.b16 %v1084, %v1083
        %v1090 = vpack.c.b16 %v1086, %v1085
        %v1092 = vsel %vm1025, %v1087, 0
        %v1095 = vsel %vm1025, %v1088, 0
        %v1098 = vsel %vm1025, %v1089, 0
        %v1101 = vsel %vm1025, %v1090, 0
        %v1104 = vsel %vm1038, %v879, 0
        %1106 = vmatpush.bf16.msra.mxu0 0
        %1107 = vmatpush.bf16.msra.mxu0 0
        %1108 = vmatpush.bf16.msra.mxu0 0
        %1109 = vmatpush.bf16.msra.mxu0 0
        %1110 = vmatpush.bf16.msra.mxu0 0
        %1111 = vmatpush.bf16.msra.mxu0 0
        %1112 = vmatpush.bf16.msra.mxu0 0
        %1113 = vmatpush.bf16.msra.mxu0 %v1104
        %1114 = vmatmul.bf16.gmra.mxu0 %v1092
        %v1115 = vpop.f32.mrf.mxu0
        %v1116 = vadd.f32 %v1052, %v1115
        %v1117 = vpop.f32.mrf.mxu0
        %v1118 = vadd.f32 %v1054, %v1117
        %1119 = vmatmul.bf16.gmra.mxu0 %v1095
        %v1120 = vpop.f32.mrf.mxu0
        %v1121 = vadd.f32 %v1057, %v1120
        %v1122 = vpop.f32.mrf.mxu0
        %v1123 = vadd.f32 %v1059, %v1122
        %1124 = vmatmul.bf16.gmra.mxu0 %v1098
        %v1125 = vpop.f32.mrf.mxu0
        %v1126 = vadd.f32 %v1062, %v1125
        %v1127 = vpop.f32.mrf.mxu0
        %v1128 = vadd.f32 %v1064, %v1127
        %1129 = vmatmul.bf16.gmra.mxu0 %v1101
        %v1130 = vpop.f32.mrf.mxu0
        %v1131 = vadd.f32 %v1067, %v1130
        %v1132 = vpop.f32.mrf.mxu0
        %v1133 = vadd.f32 %v1069, %v1132
        %1134 = vdwg.mxu0
        %v1135 = vld [vmem:[#allocation2] sm:$0xf]
        %v1136 = vld [vmem:[#allocation2 + $0x4] sm:$0x1]
        %v1137 = vld [vmem:[#allocation2 + $0xc] sm:$0xf]
        %v1138 = vld [vmem:[#allocation2 + $0x10] sm:$0x1]
        %v1139 = vld [vmem:[#allocation2 + $0x18] sm:$0xf]
        %v1140 = vld [vmem:[#allocation2 + $0x1c] sm:$0x1]
        %v1141 = vld [vmem:[#allocation2 + $0x24] sm:$0xf]
        %v1142 = vld [vmem:[#allocation2 + $0x28] sm:$0x1]
        %v1143 = vld [vmem:[#allocation2 + $0x30] sm:$0xf]
        %v1144 = vld [vmem:[#allocation2 + $0x34] sm:$0x1]
        %v1145 = vld [vmem:[#allocation2 + $0x3c] sm:$0xf]
        %v1146 = vld [vmem:[#allocation2 + $0x40] sm:$0x1]
        %v1147 = vld [vmem:[#allocation2 + $0x48] sm:$0xf]
        %v1148 = vld [vmem:[#allocation2 + $0x4c] sm:$0x1]
        %v1149 = vld [vmem:[#allocation2 + $0x54] sm:$0xf]
        %v1150 = vld [vmem:[#allocation2 + $0x58] sm:$0x1]
        %v1152 = vshrl.u32 %v1135, 16
        %v1154 = vrot.slane %v1152, 4
        %v1155 = vshll.u32 %v1135, 16
        %v1157 = vrot.slane %v1155, 5
        %v1158 = vor.u32 %v1154, %v1157
        %v1159 = vrot.slane %v1158, 4
        %v1161 = vshll.u32 %v1136, 16
        %v1163 = vrot.slane %v1161, 5
        %v1164 = vsel %vm898, %v1159, %v1163
        %v1166 = vshrl.u32 %v1137, 16
        %v1168 = vrot.slane %v1166, 4
        %v1169 = vshll.u32 %v1137, 16
        %v1171 = vrot.slane %v1169, 5
        %v1172 = vor.u32 %v1168, %v1171
        %v1173 = vrot.slane %v1172, 4
        %v1175 = vshll.u32 %v1138, 16
        %v1177 = vrot.slane %v1175, 5
        %v1178 = vsel %vm898, %v1173, %v1177
        %v1180 = vshrl.u32 %v1139, 16
        %v1182 = vrot.slane %v1180, 4
        %v1183 = vshll.u32 %v1139, 16
        %v1185 = vrot.slane %v1183, 5
        %v1186 = vor.u32 %v1182, %v1185
        %v1187 = vrot.slane %v1186, 4
        %v1189 = vshll.u32 %v1140, 16
        %v1191 = vrot.slane %v1189, 5
        %v1192 = vsel %vm898, %v1187, %v1191
        %v1194 = vshrl.u32 %v1141, 16
        %v1196 = vrot.slane %v1194, 4
        %v1197 = vshll.u32 %v1141, 16
        %v1199 = vrot.slane %v1197, 5
        %v1200 = vor.u32 %v1196, %v1199
        %v1201 = vrot.slane %v1200, 4
        %v1203 = vshll.u32 %v1142, 16
        %v1205 = vrot.slane %v1203, 5
        %v1206 = vsel %vm898, %v1201, %v1205
        %v1208 = vshrl.u32 %v1143, 16
        %v1210 = vrot.slane %v1208, 4
        %v1211 = vshll.u32 %v1143, 16
        %v1213 = vrot.slane %v1211, 5
        %v1214 = vor.u32 %v1210, %v1213
        %v1215 = vrot.slane %v1214, 4
        %v1217 = vshll.u32 %v1144, 16
        %v1219 = vrot.slane %v1217, 5
        %v1220 = vsel %vm898, %v1215, %v1219
        %v1222 = vshrl.u32 %v1145, 16
        %v1224 = vrot.slane %v1222, 4
        %v1225 = vshll.u32 %v1145, 16
        %v1227 = vrot.slane %v1225, 5
        %v1228 = vor.u32 %v1224, %v1227
        %v1229 = vrot.slane %v1228, 4
        %v1231 = vshll.u32 %v1146, 16
        %v1233 = vrot.slane %v1231, 5
        %v1234 = vsel %vm898, %v1229, %v1233
        %v1236 = vshrl.u32 %v1147, 16
        %v1238 = vrot.slane %v1236, 4
        %v1239 = vshll.u32 %v1147, 16
        %v1241 = vrot.slane %v1239, 5
        %v1242 = vor.u32 %v1238, %v1241
        %v1243 = vrot.slane %v1242, 4
        %v1245 = vshll.u32 %v1148, 16
        %v1247 = vrot.slane %v1245, 5
        %v1248 = vsel %vm898, %v1243, %v1247
        %v1250 = vshrl.u32 %v1149, 16
        %v1252 = vrot.slane %v1250, 4
        %v1253 = vshll.u32 %v1149, 16
        %v1255 = vrot.slane %v1253, 5
        %v1256 = vor.u32 %v1252, %v1255
        %v1257 = vrot.slane %v1256, 4
        %v1259 = vshll.u32 %v1150, 16
        %v1261 = vrot.slane %v1259, 5
        %v1262 = vsel %vm898, %v1257, %v1261
        %s1263 = scalar_lea.vmem %s3, 8
        %v1264 = vld [vmem:[%s1263] sm:$0xf]
        %v1265 = vunpack.c.l.b16 %v1164
        %v1266 = vunpack.c.l.b16 %v1178
        %v1267 = vunpack.c.l.b16 %v1192
        %v1268 = vunpack.c.l.b16 %v1206
        %v1269 = vunpack.c.l.b16 %v1220
        %v1270 = vunpack.c.l.b16 %v1234
        %v1271 = vunpack.c.l.b16 %v1248
        %v1272 = vunpack.c.l.b16 %v1262
        %v1273 = vpack.c.b16 %v1266, %v1265
        %v1274 = vpack.c.b16 %v1268, %v1267
        %v1275 = vpack.c.b16 %v1270, %v1269
        %v1276 = vpack.c.b16 %v1272, %v1271
        %v1278 = vsel %vm1025, %v1273, 0
        %v1281 = vsel %vm1025, %v1274, 0
        %v1284 = vsel %vm1025, %v1275, 0
        %v1287 = vsel %vm1025, %v1276, 0
        %v1290 = vsel %vm1038, %v1264, 0
        %1292 = vmatpush.bf16.msra.mxu0 0
        %1293 = vmatpush.bf16.msra.mxu0 0
        %1294 = vmatpush.bf16.msra.mxu0 0
        %1295 = vmatpush.bf16.msra.mxu0 0
        %1296 = vmatpush.bf16.msra.mxu0 0
        %1297 = vmatpush.bf16.msra.mxu0 0
        %1298 = vmatpush.bf16.msra.mxu0 0
        %1299 = vmatpush.bf16.msra.mxu0 %v1290
        %1300 = vmatmul.bf16.gmra.mxu0 %v1278
        %v1301 = vpop.f32.mrf.mxu0
        %v1302 = vadd.f32 0.0, %v1301
        %v1303 = vpop.f32.mrf.mxu0
        %v1304 = vadd.f32 0.0, %v1303
        %1305 = vmatmul.bf16.gmra.mxu0 %v1281
        %v1306 = vpop.f32.mrf.mxu0
        %v1307 = vadd.f32 0.0, %v1306
        %v1308 = vpop.f32.mrf.mxu0
        %v1309 = vadd.f32 0.0, %v1308
        %1310 = vmatmul.bf16.gmra.mxu0 %v1284
        %v1311 = vpop.f32.mrf.mxu0
        %v1312 = vadd.f32 0.0, %v1311
        %v1313 = vpop.f32.mrf.mxu0
        %v1314 = vadd.f32 0.0, %v1313
        %1315 = vmatmul.bf16.gmra.mxu0 %v1287
        %v1316 = vpop.f32.mrf.mxu0
        %v1317 = vadd.f32 0.0, %v1316
        %v1318 = vpop.f32.mrf.mxu0
        %v1319 = vadd.f32 0.0, %v1318
        %1320 = vdwg.mxu0
        %v1321 = vadd.f32 %v1116, %v1302
        %v1322 = vadd.f32 %v1118, %v1304
        %v1323 = vadd.f32 %v1121, %v1307
        %v1324 = vadd.f32 %v1123, %v1309
        %v1325 = vadd.f32 %v1126, %v1312
        %v1326 = vadd.f32 %v1128, %v1314
        %v1327 = vadd.f32 %v1131, %v1317
        %v1328 = vadd.f32 %v1133, %v1319
        %s1329 = scalar_lea.vmem [#allocation2], 108
        %v1330 = vld [vmem:[%s1329] sm:$0xf]
        %v1331 = vld [vmem:[%s1329 + $0xc] sm:$0xf]
        %v1332 = vld [vmem:[%s1329 + $0x18] sm:$0xf]
        %v1333 = vld [vmem:[%s1329 + $0x24] sm:$0xf]
        %v1334 = vld [vmem:[%s1329 + $0x30] sm:$0xf]
        %v1335 = vld [vmem:[%s1329 + $0x3c] sm:$0xf]
        %v1336 = vld [vmem:[%s1329 + $0x48] sm:$0xf]
        %v1337 = vld [vmem:[%s1329 + $0x54] sm:$0xf]
        %s1338 = scalar_lea.vmem %s3, 12
        %v1339 = vld [vmem:[%s1338] sm:$0xf]
        %v1348 = vunpack.c.l.b16 %v1330
        %v1349 = vunpack.c.l.b16 %v1331
        %v1350 = vunpack.c.l.b16 %v1332
        %v1351 = vunpack.c.l.b16 %v1333
        %v1352 = vunpack.c.l.b16 %v1334
        %v1353 = vunpack.c.l.b16 %v1335
        %v1354 = vunpack.c.l.b16 %v1336
        %v1355 = vunpack.c.l.b16 %v1337
        %v1356 = vpack.c.b16 %v1349, %v1348
        %v1357 = vpack.c.b16 %v1351, %v1350
        %v1358 = vpack.c.b16 %v1353, %v1352
        %v1359 = vpack.c.b16 %v1355, %v1354
        %v1361 = vsel %vm1025, %v1356, 0
        %v1364 = vsel %vm1025, %v1357, 0
        %v1367 = vsel %vm1025, %v1358, 0
        %v1370 = vsel %vm1025, %v1359, 0
        %v1373 = vsel %vm1038, %v1339, 0
        %1375 = vmatpush.bf16.msra.mxu0 0
        %1376 = vmatpush.bf16.msra.mxu0 0
        %1377 = vmatpush.bf16.msra.mxu0 0
        %1378 = vmatpush.bf16.msra.mxu0 0
        %1379 = vmatpush.bf16.msra.mxu0 0
        %1380 = vmatpush.bf16.msra.mxu0 0
        %1381 = vmatpush.bf16.msra.mxu0 0
        %1382 = vmatpush.bf16.msra.mxu0 %v1373
        %1383 = vmatmul.bf16.gmra.mxu0 %v1361
        %v1384 = vpop.f32.mrf.mxu0
        %v1385 = vadd.f32 0.0, %v1384
        %v1386 = vpop.f32.mrf.mxu0
        %v1387 = vadd.f32 0.0, %v1386
        %1388 = vmatmul.bf16.gmra.mxu0 %v1364
        %v1389 = vpop.f32.mrf.mxu0
        %v1390 = vadd.f32 0.0, %v1389
        %v1391 = vpop.f32.mrf.mxu0
        %v1392 = vadd.f32 0.0, %v1391
        %1393 = vmatmul.bf16.gmra.mxu0 %v1367
        %v1394 = vpop.f32.mrf.mxu0
        %v1395 = vadd.f32 0.0, %v1394
        %v1396 = vpop.f32.mrf.mxu0
        %v1397 = vadd.f32 0.0, %v1396
        %1398 = vmatmul.bf16.gmra.mxu0 %v1370
        %v1399 = vpop.f32.mrf.mxu0
        %v1400 = vadd.f32 0.0, %v1399
        %v1401 = vpop.f32.mrf.mxu0
        %v1402 = vadd.f32 0.0, %v1401
        %1403 = vdwg.mxu0
        %v1404 = vadd.f32 %v1321, %v1385
        %v1405 = vadd.f32 %v1322, %v1387
        %v1406 = vadd.f32 %v1323, %v1390
        %v1407 = vadd.f32 %v1324, %v1392
        %v1408 = vadd.f32 %v1325, %v1395
        %v1409 = vadd.f32 %v1326, %v1397
        %v1410 = vadd.f32 %v1327, %v1400
        %v1411 = vadd.f32 %v1328, %v1402
        %v1412 = vld [vmem:[%s1329 + $0x4] sm:$0xf]
        %v1413 = vld [vmem:[%s1329 + $0x8] sm:$0x1]
        %v1414 = vld [vmem:[%s1329 + $0x10] sm:$0xf]
        %v1415 = vld [vmem:[%s1329 + $0x14] sm:$0x1]
        %v1416 = vld [vmem:[%s1329 + $0x1c] sm:$0xf]
        %v1417 = vld [vmem:[%s1329 + $0x20] sm:$0x1]
        %v1418 = vld [vmem:[%s1329 + $0x28] sm:$0xf]
        %v1419 = vld [vmem:[%s1329 + $0x2c] sm:$0x1]
        %v1420 = vld [vmem:[%s1329 + $0x34] sm:$0xf]
        %v1421 = vld [vmem:[%s1329 + $0x38] sm:$0x1]
        %v1422 = vld [vmem:[%s1329 + $0x40] sm:$0xf]
        %v1423 = vld [vmem:[%s1329 + $0x44] sm:$0x1]
        %v1424 = vld [vmem:[%s1329 + $0x4c] sm:$0xf]
        %v1425 = vld [vmem:[%s1329 + $0x50] sm:$0x1]
        %v1426 = vld [vmem:[%s1329 + $0x58] sm:$0xf]
        %v1427 = vld [vmem:[%s1329 + $0x5c] sm:$0x1]
        %v1429 = vshrl.u32 %v1412, 16
        %v1431 = vrot.slane %v1429, 4
        %v1432 = vshll.u32 %v1412, 16
        %v1434 = vrot.slane %v1432, 5
        %v1435 = vor.u32 %v1431, %v1434
        %v1436 = vrot.slane %v1435, 4
        %v1438 = vshll.u32 %v1413, 16
        %v1440 = vrot.slane %v1438, 5
        %v1441 = vsel %vm898, %v1436, %v1440
        %v1443 = vshrl.u32 %v1414, 16
        %v1445 = vrot.slane %v1443, 4
        %v1446 = vshll.u32 %v1414, 16
        %v1448 = vrot.slane %v1446, 5
        %v1449 = vor.u32 %v1445, %v1448
        %v1450 = vrot.slane %v1449, 4
        %v1452 = vshll.u32 %v1415, 16
        %v1454 = vrot.slane %v1452, 5
        %v1455 = vsel %vm898, %v1450, %v1454
        %v1457 = vshrl.u32 %v1416, 16
        %v1459 = vrot.slane %v1457, 4
        %v1460 = vshll.u32 %v1416, 16
        %v1462 = vrot.slane %v1460, 5
        %v1463 = vor.u32 %v1459, %v1462
        %v1464 = vrot.slane %v1463, 4
        %v1466 = vshll.u32 %v1417, 16
        %v1468 = vrot.slane %v1466, 5
        %v1469 = vsel %vm898, %v1464, %v1468
        %v1471 = vshrl.u32 %v1418, 16
        %v1473 = vrot.slane %v1471, 4
        %v1474 = vshll.u32 %v1418, 16
        %v1476 = vrot.slane %v1474, 5
        %v1477 = vor.u32 %v1473, %v1476
        %v1478 = vrot.slane %v1477, 4
        %v1480 = vshll.u32 %v1419, 16
        %v1482 = vrot.slane %v1480, 5
        %v1483 = vsel %vm898, %v1478, %v1482
        %v1485 = vshrl.u32 %v1420, 16
        %v1487 = vrot.slane %v1485, 4
        %v1488 = vshll.u32 %v1420, 16
        %v1490 = vrot.slane %v1488, 5
        %v1491 = vor.u32 %v1487, %v1490
        %v1492 = vrot.slane %v1491, 4
        %v1494 = vshll.u32 %v1421, 16
        %v1496 = vrot.slane %v1494, 5
        %v1497 = vsel %vm898, %v1492, %v1496
        %v1499 = vshrl.u32 %v1422, 16
        %v1501 = vrot.slane %v1499, 4
        %v1502 = vshll.u32 %v1422, 16
        %v1504 = vrot.slane %v1502, 5
        %v1505 = vor.u32 %v1501, %v1504
        %v1506 = vrot.slane %v1505, 4
        %v1508 = vshll.u32 %v1423, 16
        %v1510 = vrot.slane %v1508, 5
        %v1511 = vsel %vm898, %v1506, %v1510
        %v1513 = vshrl.u32 %v1424, 16
        %v1515 = vrot.slane %v1513, 4
        %v1516 = vshll.u32 %v1424, 16
        %v1518 = vrot.slane %v1516, 5
        %v1519 = vor.u32 %v1515, %v1518
        %v1520 = vrot.slane %v1519, 4
        %v1522 = vshll.u32 %v1425, 16
        %v1524 = vrot.slane %v1522, 5
        %v1525 = vsel %vm898, %v1520, %v1524
        %v1527 = vshrl.u32 %v1426, 16
        %v1529 = vrot.slane %v1527, 4
        %v1530 = vshll.u32 %v1426, 16
        %v1532 = vrot.slane %v1530, 5
        %v1533 = vor.u32 %v1529, %v1532
        %v1534 = vrot.slane %v1533, 4
        %v1536 = vshll.u32 %v1427, 16
        %v1538 = vrot.slane %v1536, 5
        %v1539 = vsel %vm898, %v1534, %v1538
        %s1540 = scalar_lea.vmem %s3, 16
        %v1541 = vld [vmem:[%s1540] sm:$0xf]
        %v1542 = vunpack.c.l.b16 %v1441
        %v1543 = vunpack.c.l.b16 %v1455
        %v1544 = vunpack.c.l.b16 %v1469
        %v1545 = vunpack.c.l.b16 %v1483
        %v1546 = vunpack.c.l.b16 %v1497
        %v1547 = vunpack.c.l.b16 %v1511
        %v1548 = vunpack.c.l.b16 %v1525
        %v1549 = vunpack.c.l.b16 %v1539
        %v1550 = vpack.c.b16 %v1543, %v1542
        %v1551 = vpack.c.b16 %v1545, %v1544
        %v1552 = vpack.c.b16 %v1547, %v1546
        %v1553 = vpack.c.b16 %v1549, %v1548
        %v1555 = vsel %vm1025, %v1550, 0
        %v1558 = vsel %vm1025, %v1551, 0
        %v1561 = vsel %vm1025, %v1552, 0
        %v1564 = vsel %vm1025, %v1553, 0
        %v1567 = vsel %vm1038, %v1541, 0
        %1569 = vmatpush.bf16.msra.mxu0 0
        %1570 = vmatpush.bf16.msra.mxu0 0
        %1571 = vmatpush.bf16.msra.mxu0 0
        %1572 = vmatpush.bf16.msra.mxu0 0
        %1573 = vmatpush.bf16.msra.mxu0 0
        %1574 = vmatpush.bf16.msra.mxu0 0
        %1575 = vmatpush.bf16.msra.mxu0 0
        %1576 = vmatpush.bf16.msra.mxu0 %v1567
        %1577 = vmatmul.bf16.gmra.mxu0 %v1555
        %v1578 = vpop.f32.mrf.mxu0
        %v1579 = vadd.f32 0.0, %v1578
        %v1580 = vpop.f32.mrf.mxu0
        %v1581 = vadd.f32 0.0, %v1580
        %1582 = vmatmul.bf16.gmra.mxu0 %v1558
        %v1583 = vpop.f32.mrf.mxu0
        %v1584 = vadd.f32 0.0, %v1583
        %v1585 = vpop.f32.mrf.mxu0
        %v1586 = vadd.f32 0.0, %v1585
        %1587 = vmatmul.bf16.gmra.mxu0 %v1561
        %v1588 = vpop.f32.mrf.mxu0
        %v1589 = vadd.f32 0.0, %v1588
        %v1590 = vpop.f32.mrf.mxu0
        %v1591 = vadd.f32 0.0, %v1590
        %1592 = vmatmul.bf16.gmra.mxu0 %v1564
        %v1593 = vpop.f32.mrf.mxu0
        %v1594 = vadd.f32 0.0, %v1593
        %v1595 = vpop.f32.mrf.mxu0
        %v1596 = vadd.f32 0.0, %v1595
        %1597 = vdwg.mxu0
        %v1598 = vadd.f32 %v1404, %v1579
        %v1599 = vadd.f32 %v1405, %v1581
        %v1600 = vadd.f32 %v1406, %v1584
        %v1601 = vadd.f32 %v1407, %v1586
        %v1602 = vadd.f32 %v1408, %v1589
        %v1603 = vadd.f32 %v1409, %v1591
        %v1604 = vadd.f32 %v1410, %v1594
        %v1605 = vadd.f32 %v1411, %v1596
        %v1606 = vld [vmem:[%s1329] sm:$0xf]
        %v1607 = vld [vmem:[%s1329 + $0x4] sm:$0x1]
        %v1608 = vld [vmem:[%s1329 + $0xc] sm:$0xf]
        %v1609 = vld [vmem:[%s1329 + $0x10] sm:$0x1]
        %v1610 = vld [vmem:[%s1329 + $0x18] sm:$0xf]
        %v1611 = vld [vmem:[%s1329 + $0x1c] sm:$0x1]
        %v1612 = vld [vmem:[%s1329 + $0x24] sm:$0xf]
        %v1613 = vld [vmem:[%s1329 + $0x28] sm:$0x1]
        %v1614 = vld [vmem:[%s1329 + $0x30] sm:$0xf]
        %v1615 = vld [vmem:[%s1329 + $0x34] sm:$0x1]
        %v1616 = vld [vmem:[%s1329 + $0x3c] sm:$0xf]
        %v1617 = vld [vmem:[%s1329 + $0x40] sm:$0x1]
        %v1618 = vld [vmem:[%s1329 + $0x48] sm:$0xf]
        %v1619 = vld [vmem:[%s1329 + $0x4c] sm:$0x1]
        %v1620 = vld [vmem:[%s1329 + $0x54] sm:$0xf]
        %v1621 = vld [vmem:[%s1329 + $0x58] sm:$0x1]
        %v1623 = vshrl.u32 %v1606, 16
        %v1625 = vrot.slane %v1623, 4
        %v1626 = vshll.u32 %v1606, 16
        %v1628 = vrot.slane %v1626, 5
        %v1629 = vor.u32 %v1625, %v1628
        %v1630 = vrot.slane %v1629, 4
        %v1632 = vshll.u32 %v1607, 16
        %v1634 = vrot.slane %v1632, 5
        %v1635 = vsel %vm898, %v1630, %v1634
        %v1637 = vshrl.u32 %v1608, 16
        %v1639 = vrot.slane %v1637, 4
        %v1640 = vshll.u32 %v1608, 16
        %v1642 = vrot.slane %v1640, 5
        %v1643 = vor.u32 %v1639, %v1642
        %v1644 = vrot.slane %v1643, 4
        %v1646 = vshll.u32 %v1609, 16
        %v1648 = vrot.slane %v1646, 5
        %v1649 = vsel %vm898, %v1644, %v1648
        %v1651 = vshrl.u32 %v1610, 16
        %v1653 = vrot.slane %v1651, 4
        %v1654 = vshll.u32 %v1610, 16
        %v1656 = vrot.slane %v1654, 5
        %v1657 = vor.u32 %v1653, %v1656
        %v1658 = vrot.slane %v1657, 4
        %v1660 = vshll.u32 %v1611, 16
        %v1662 = vrot.slane %v1660, 5
        %v1663 = vsel %vm898, %v1658, %v1662
        %v1665 = vshrl.u32 %v1612, 16
        %v1667 = vrot.slane %v1665, 4
        %v1668 = vshll.u32 %v1612, 16
        %v1670 = vrot.slane %v1668, 5
        %v1671 = vor.u32 %v1667, %v1670
        %v1672 = vrot.slane %v1671, 4
        %v1674 = vshll.u32 %v1613, 16
        %v1676 = vrot.slane %v1674, 5
        %v1677 = vsel %vm898, %v1672, %v1676
        %v1679 = vshrl.u32 %v1614, 16
        %v1681 = vrot.slane %v1679, 4
        %v1682 = vshll.u32 %v1614, 16
        %v1684 = vrot.slane %v1682, 5
        %v1685 = vor.u32 %v1681, %v1684
        %v1686 = vrot.slane %v1685, 4
        %v1688 = vshll.u32 %v1615, 16
        %v1690 = vrot.slane %v1688, 5
        %v1691 = vsel %vm898, %v1686, %v1690
        %v1693 = vshrl.u32 %v1616, 16
        %v1695 = vrot.slane %v1693, 4
        %v1696 = vshll.u32 %v1616, 16
        %v1698 = vrot.slane %v1696, 5
        %v1699 = vor.u32 %v1695, %v1698
        %v1700 = vrot.slane %v1699, 4
        %v1702 = vshll.u32 %v1617, 16
        %v1704 = vrot.slane %v1702, 5
        %v1705 = vsel %vm898, %v1700, %v1704
        %v1707 = vshrl.u32 %v1618, 16
        %v1709 = vrot.slane %v1707, 4
        %v1710 = vshll.u32 %v1618, 16
        %v1712 = vrot.slane %v1710, 5
        %v1713 = vor.u32 %v1709, %v1712
        %v1714 = vrot.slane %v1713, 4
        %v1716 = vshll.u32 %v1619, 16
        %v1718 = vrot.slane %v1716, 5
        %v1719 = vsel %vm898, %v1714, %v1718
        %v1721 = vshrl.u32 %v1620, 16
        %v1723 = vrot.slane %v1721, 4
        %v1724 = vshll.u32 %v1620, 16
        %v1726 = vrot.slane %v1724, 5
        %v1727 = vor.u32 %v1723, %v1726
        %v1728 = vrot.slane %v1727, 4
        %v1730 = vshll.u32 %v1621, 16
        %v1732 = vrot.slane %v1730, 5
        %v1733 = vsel %vm898, %v1728, %v1732
        %s1734 = scalar_lea.vmem %s3, 20
        %v1735 = vld [vmem:[%s1734] sm:$0xf]
        %v1736 = vunpack.c.l.b16 %v1635
        %v1737 = vunpack.c.l.b16 %v1649
        %v1738 = vunpack.c.l.b16 %v1663
        %v1739 = vunpack.c.l.b16 %v1677
        %v1740 = vunpack.c.l.b16 %v1691
        %v1741 = vunpack.c.l.b16 %v1705
        %v1742 = vunpack.c.l.b16 %v1719
        %v1743 = vunpack.c.l.b16 %v1733
        %v1744 = vpack.c.b16 %v1737, %v1736
        %v1745 = vpack.c.b16 %v1739, %v1738
        %v1746 = vpack.c.b16 %v1741, %v1740
        %v1747 = vpack.c.b16 %v1743, %v1742
        %v1749 = vsel %vm1025, %v1744, 0
        %v1752 = vsel %vm1025, %v1745, 0
        %v1755 = vsel %vm1025, %v1746, 0
        %v1758 = vsel %vm1025, %v1747, 0
        %v1761 = vsel %vm1038, %v1735, 0
        %1763 = vmatpush.bf16.msra.mxu0 0
        %1764 = vmatpush.bf16.msra.mxu0 0
        %1765 = vmatpush.bf16.msra.mxu0 0
        %1766 = vmatpush.bf16.msra.mxu0 0
        %1767 = vmatpush.bf16.msra.mxu0 0
        %1768 = vmatpush.bf16.msra.mxu0 0
        %1769 = vmatpush.bf16.msra.mxu0 0
        %1770 = vmatpush.bf16.msra.mxu0 %v1761
        %1771 = vmatmul.bf16.gmra.mxu0 %v1749
        %v1772 = vpop.f32.mrf.mxu0
        %v1773 = vadd.f32 0.0, %v1772
        %v1774 = vpop.f32.mrf.mxu0
        %v1775 = vadd.f32 0.0, %v1774
        %1776 = vmatmul.bf16.gmra.mxu0 %v1752
        %v1777 = vpop.f32.mrf.mxu0
        %v1778 = vadd.f32 0.0, %v1777
        %v1779 = vpop.f32.mrf.mxu0
        %v1780 = vadd.f32 0.0, %v1779
        %1781 = vmatmul.bf16.gmra.mxu0 %v1755
        %v1782 = vpop.f32.mrf.mxu0
        %v1783 = vadd.f32 0.0, %v1782
        %v1784 = vpop.f32.mrf.mxu0
        %v1785 = vadd.f32 0.0, %v1784
        %1786 = vmatmul.bf16.gmra.mxu0 %v1758
        %v1787 = vpop.f32.mrf.mxu0
        %v1788 = vadd.f32 0.0, %v1787
        %v1789 = vpop.f32.mrf.mxu0
        %v1790 = vadd.f32 0.0, %v1789
        %1791 = vdwg.mxu0
        %v1792 = vadd.f32 %v1598, %v1773
        %v1793 = vadd.f32 %v1599, %v1775
        %v1794 = vadd.f32 %v1600, %v1778
        %v1795 = vadd.f32 %v1601, %v1780
        %v1796 = vadd.f32 %v1602, %v1783
        %v1797 = vadd.f32 %v1603, %v1785
        %v1798 = vadd.f32 %v1604, %v1788
        %v1799 = vadd.f32 %v1605, %v1790
        %v1800 = vld [vmem:[%s822] sm:$0xf]
        %v1801 = vld [vmem:[%s822 + $0xc] sm:$0xf]
        %v1802 = vld [vmem:[%s822 + $0x18] sm:$0xf]
        %v1803 = vld [vmem:[%s822 + $0x24] sm:$0xf]
        %v1804 = vld [vmem:[%s822 + $0x30] sm:$0xf]
        %v1805 = vld [vmem:[%s822 + $0x3c] sm:$0xf]
        %v1806 = vld [vmem:[%s822 + $0x48] sm:$0xf]
        %v1807 = vld [vmem:[%s822 + $0x54] sm:$0xf]
        %s1808 = scalar_lea.vmem %s3, 24
        %v1809 = vld [vmem:[%s1808] sm:$0xf]
        %v1818 = vunpack.c.l.b16 %v1800
        %v1819 = vunpack.c.l.b16 %v1801
        %v1820 = vunpack.c.l.b16 %v1802
        %v1821 = vunpack.c.l.b16 %v1803
        %v1822 = vunpack.c.l.b16 %v1804
        %v1823 = vunpack.c.l.b16 %v1805
        %v1824 = vunpack.c.l.b16 %v1806
        %v1825 = vunpack.c.l.b16 %v1807
        %v1826 = vpack.c.b16 %v1819, %v1818
        %v1827 = vpack.c.b16 %v1821, %v1820
        %v1828 = vpack.c.b16 %v1823, %v1822
        %v1829 = vpack.c.b16 %v1825, %v1824
        %v1831 = vsel %vm1025, %v1826, 0
        %v1834 = vsel %vm1025, %v1827, 0
        %v1837 = vsel %vm1025, %v1828, 0
        %v1840 = vsel %vm1025, %v1829, 0
        %v1843 = vsel %vm1038, %v1809, 0
        %1845 = vmatpush.bf16.msra.mxu0 0
        %1846 = vmatpush.bf16.msra.mxu0 0
        %1847 = vmatpush.bf16.msra.mxu0 0
        %1848 = vmatpush.bf16.msra.mxu0 0
        %1849 = vmatpush.bf16.msra.mxu0 0
        %1850 = vmatpush.bf16.msra.mxu0 0
        %1851 = vmatpush.bf16.msra.mxu0 0
        %1852 = vmatpush.bf16.msra.mxu0 %v1843
        %1853 = vmatmul.bf16.gmra.mxu0 %v1831
        %v1854 = vpop.f32.mrf.mxu0
        %v1855 = vadd.f32 0.0, %v1854
        %v1856 = vpop.f32.mrf.mxu0
        %v1857 = vadd.f32 0.0, %v1856
        %1858 = vmatmul.bf16.gmra.mxu0 %v1834
        %v1859 = vpop.f32.mrf.mxu0
        %v1860 = vadd.f32 0.0, %v1859
        %v1861 = vpop.f32.mrf.mxu0
        %v1862 = vadd.f32 0.0, %v1861
        %1863 = vmatmul.bf16.gmra.mxu0 %v1837
        %v1864 = vpop.f32.mrf.mxu0
        %v1865 = vadd.f32 0.0, %v1864
        %v1866 = vpop.f32.mrf.mxu0
        %v1867 = vadd.f32 0.0, %v1866
        %1868 = vmatmul.bf16.gmra.mxu0 %v1840
        %v1869 = vpop.f32.mrf.mxu0
        %v1870 = vadd.f32 0.0, %v1869
        %v1871 = vpop.f32.mrf.mxu0
        %v1872 = vadd.f32 0.0, %v1871
        %1873 = vdwg.mxu0
        %v1874 = vadd.f32 %v1792, %v1855
        %v1875 = vadd.f32 %v1793, %v1857
        %v1876 = vadd.f32 %v1794, %v1860
        %v1877 = vadd.f32 %v1795, %v1862
        %v1878 = vadd.f32 %v1796, %v1865
        %v1879 = vadd.f32 %v1797, %v1867
        %v1880 = vadd.f32 %v1798, %v1870
        %v1881 = vadd.f32 %v1799, %v1872
        %v1882 = vld [vmem:[%s822 + $0x4] sm:$0xf]
        %v1883 = vld [vmem:[%s822 + $0x8] sm:$0x1]
        %v1884 = vld [vmem:[%s822 + $0x10] sm:$0xf]
        %v1885 = vld [vmem:[%s822 + $0x14] sm:$0x1]
        %v1886 = vld [vmem:[%s822 + $0x1c] sm:$0xf]
        %v1887 = vld [vmem:[%s822 + $0x20] sm:$0x1]
        %v1888 = vld [vmem:[%s822 + $0x28] sm:$0xf]
        %v1889 = vld [vmem:[%s822 + $0x2c] sm:$0x1]
        %v1890 = vld [vmem:[%s822 + $0x34] sm:$0xf]
        %v1891 = vld [vmem:[%s822 + $0x38] sm:$0x1]
        %v1892 = vld [vmem:[%s822 + $0x40] sm:$0xf]
        %v1893 = vld [vmem:[%s822 + $0x44] sm:$0x1]
        %v1894 = vld [vmem:[%s822 + $0x4c] sm:$0xf]
        %v1895 = vld [vmem:[%s822 + $0x50] sm:$0x1]
        %v1896 = vld [vmem:[%s822 + $0x58] sm:$0xf]
        %v1897 = vld [vmem:[%s822 + $0x5c] sm:$0x1]
        %v1899 = vshrl.u32 %v1882, 16
        %v1901 = vrot.slane %v1899, 4
        %v1902 = vshll.u32 %v1882, 16
        %v1904 = vrot.slane %v1902, 5
        %v1905 = vor.u32 %v1901, %v1904
        %v1906 = vrot.slane %v1905, 4
        %v1908 = vshll.u32 %v1883, 16
        %v1910 = vrot.slane %v1908, 5
        %v1911 = vsel %vm898, %v1906, %v1910
        %v1913 = vshrl.u32 %v1884, 16
        %v1915 = vrot.slane %v1913, 4
        %v1916 = vshll.u32 %v1884, 16
        %v1918 = vrot.slane %v1916, 5
        %v1919 = vor.u32 %v1915, %v1918
        %v1920 = vrot.slane %v1919, 4
        %v1922 = vshll.u32 %v1885, 16
        %v1924 = vrot.slane %v1922, 5
        %v1925 = vsel %vm898, %v1920, %v1924
        %v1927 = vshrl.u32 %v1886, 16
        %v1929 = vrot.slane %v1927, 4
        %v1930 = vshll.u32 %v1886, 16
        %v1932 = vrot.slane %v1930, 5
        %v1933 = vor.u32 %v1929, %v1932
        %v1934 = vrot.slane %v1933, 4
        %v1936 = vshll.u32 %v1887, 16
        %v1938 = vrot.slane %v1936, 5
        %v1939 = vsel %vm898, %v1934, %v1938
        %v1941 = vshrl.u32 %v1888, 16
        %v1943 = vrot.slane %v1941, 4
        %v1944 = vshll.u32 %v1888, 16
        %v1946 = vrot.slane %v1944, 5
        %v1947 = vor.u32 %v1943, %v1946
        %v1948 = vrot.slane %v1947, 4
        %v1950 = vshll.u32 %v1889, 16
        %v1952 = vrot.slane %v1950, 5
        %v1953 = vsel %vm898, %v1948, %v1952
        %v1955 = vshrl.u32 %v1890, 16
        %v1957 = vrot.slane %v1955, 4
        %v1958 = vshll.u32 %v1890, 16
        %v1960 = vrot.slane %v1958, 5
        %v1961 = vor.u32 %v1957, %v1960
        %v1962 = vrot.slane %v1961, 4
        %v1964 = vshll.u32 %v1891, 16
        %v1966 = vrot.slane %v1964, 5
        %v1967 = vsel %vm898, %v1962, %v1966
        %v1969 = vshrl.u32 %v1892, 16
        %v1971 = vrot.slane %v1969, 4
        %v1972 = vshll.u32 %v1892, 16
        %v1974 = vrot.slane %v1972, 5
        %v1975 = vor.u32 %v1971, %v1974
        %v1976 = vrot.slane %v1975, 4
        %v1978 = vshll.u32 %v1893, 16
        %v1980 = vrot.slane %v1978, 5
        %v1981 = vsel %vm898, %v1976, %v1980
        %v1983 = vshrl.u32 %v1894, 16
        %v1985 = vrot.slane %v1983, 4
        %v1986 = vshll.u32 %v1894, 16
        %v1988 = vrot.slane %v1986, 5
        %v1989 = vor.u32 %v1985, %v1988
        %v1990 = vrot.slane %v1989, 4
        %v1992 = vshll.u32 %v1895, 16
        %v1994 = vrot.slane %v1992, 5
        %v1995 = vsel %vm898, %v1990, %v1994
        %v1997 = vshrl.u32 %v1896, 16
        %v1999 = vrot.slane %v1997, 4
        %v2000 = vshll.u32 %v1896, 16
        %v2002 = vrot.slane %v2000, 5
        %v2003 = vor.u32 %v1999, %v2002
        %v2004 = vrot.slane %v2003, 4
        %v2006 = vshll.u32 %v1897, 16
        %v2008 = vrot.slane %v2006, 5
        %v2009 = vsel %vm898, %v2004, %v2008
        %s2010 = scalar_lea.vmem %s3, 28
        %v2011 = vld [vmem:[%s2010] sm:$0xf]
        %v2012 = vunpack.c.l.b16 %v1911
        %v2013 = vunpack.c.l.b16 %v1925
        %v2014 = vunpack.c.l.b16 %v1939
        %v2015 = vunpack.c.l.b16 %v1953
        %v2016 = vunpack.c.l.b16 %v1967
        %v2017 = vunpack.c.l.b16 %v1981
        %v2018 = vunpack.c.l.b16 %v1995
        %v2019 = vunpack.c.l.b16 %v2009
        %v2020 = vpack.c.b16 %v2013, %v2012
        %v2021 = vpack.c.b16 %v2015, %v2014
        %v2022 = vpack.c.b16 %v2017, %v2016
        %v2023 = vpack.c.b16 %v2019, %v2018
        %v2025 = vsel %vm1025, %v2020, 0
        %v2028 = vsel %vm1025, %v2021, 0
        %v2031 = vsel %vm1025, %v2022, 0
        %v2034 = vsel %vm1025, %v2023, 0
        %v2037 = vsel %vm1038, %v2011, 0
        %2039 = vmatpush.bf16.msra.mxu0 0
        %2040 = vmatpush.bf16.msra.mxu0 0
        %2041 = vmatpush.bf16.msra.mxu0 0
        %2042 = vmatpush.bf16.msra.mxu0 0
        %2043 = vmatpush.bf16.msra.mxu0 0
        %2044 = vmatpush.bf16.msra.mxu0 0
        %2045 = vmatpush.bf16.msra.mxu0 0
        %2046 = vmatpush.bf16.msra.mxu0 %v2037
        %2047 = vmatmul.bf16.gmra.mxu0 %v2025
        %v2048 = vpop.f32.mrf.mxu0
        %v2049 = vadd.f32 0.0, %v2048
        %v2050 = vpop.f32.mrf.mxu0
        %v2051 = vadd.f32 0.0, %v2050
        %2052 = vmatmul.bf16.gmra.mxu0 %v2028
        %v2053 = vpop.f32.mrf.mxu0
        %v2054 = vadd.f32 0.0, %v2053
        %v2055 = vpop.f32.mrf.mxu0
        %v2056 = vadd.f32 0.0, %v2055
        %2057 = vmatmul.bf16.gmra.mxu0 %v2031
        %v2058 = vpop.f32.mrf.mxu0
        %v2059 = vadd.f32 0.0, %v2058
        %v2060 = vpop.f32.mrf.mxu0
        %v2061 = vadd.f32 0.0, %v2060
        %2062 = vmatmul.bf16.gmra.mxu0 %v2034
        %v2063 = vpop.f32.mrf.mxu0
        %v2064 = vadd.f32 0.0, %v2063
        %v2065 = vpop.f32.mrf.mxu0
        %v2066 = vadd.f32 0.0, %v2065
        %2067 = vdwg.mxu0
        %v2068 = vadd.f32 %v1874, %v2049
        %v2069 = vadd.f32 %v1875, %v2051
        %v2070 = vadd.f32 %v1876, %v2054
        %v2071 = vadd.f32 %v1877, %v2056
        %v2072 = vadd.f32 %v1878, %v2059
        %v2073 = vadd.f32 %v1879, %v2061
        %v2074 = vadd.f32 %v1880, %v2064
        %v2075 = vadd.f32 %v1881, %v2066
        %v2076 = vld [vmem:[%s822] sm:$0xf]
        %v2077 = vld [vmem:[%s822 + $0x4] sm:$0x1]
        %v2078 = vld [vmem:[%s822 + $0xc] sm:$0xf]
        %v2079 = vld [vmem:[%s822 + $0x10] sm:$0x1]
        %v2080 = vld [vmem:[%s822 + $0x18] sm:$0xf]
        %v2081 = vld [vmem:[%s822 + $0x1c] sm:$0x1]
        %v2082 = vld [vmem:[%s822 + $0x24] sm:$0xf]
        %v2083 = vld [vmem:[%s822 + $0x28] sm:$0x1]
        %v2084 = vld [vmem:[%s822 + $0x30] sm:$0xf]
        %v2085 = vld [vmem:[%s822 + $0x34] sm:$0x1]
        %v2086 = vld [vmem:[%s822 + $0x3c] sm:$0xf]
        %v2087 = vld [vmem:[%s822 + $0x40] sm:$0x1]
        %v2088 = vld [vmem:[%s822 + $0x48] sm:$0xf]
        %v2089 = vld [vmem:[%s822 + $0x4c] sm:$0x1]
        %v2090 = vld [vmem:[%s822 + $0x54] sm:$0xf]
        %v2091 = vld [vmem:[%s822 + $0x58] sm:$0x1]
        %v2093 = vshrl.u32 %v2076, 16
        %v2095 = vrot.slane %v2093, 4
        %v2096 = vshll.u32 %v2076, 16
        %v2098 = vrot.slane %v2096, 5
        %v2099 = vor.u32 %v2095, %v2098
        %v2100 = vrot.slane %v2099, 4
        %v2102 = vshll.u32 %v2077, 16
        %v2104 = vrot.slane %v2102, 5
        %v2105 = vsel %vm898, %v2100, %v2104
        %v2107 = vshrl.u32 %v2078, 16
        %v2109 = vrot.slane %v2107, 4
        %v2110 = vshll.u32 %v2078, 16
        %v2112 = vrot.slane %v2110, 5
        %v2113 = vor.u32 %v2109, %v2112
        %v2114 = vrot.slane %v2113, 4
        %v2116 = vshll.u32 %v2079, 16
        %v2118 = vrot.slane %v2116, 5
        %v2119 = vsel %vm898, %v2114, %v2118
        %v2121 = vshrl.u32 %v2080, 16
        %v2123 = vrot.slane %v2121, 4
        %v2124 = vshll.u32 %v2080, 16
        %v2126 = vrot.slane %v2124, 5
        %v2127 = vor.u32 %v2123, %v2126
        %v2128 = vrot.slane %v2127, 4
        %v2130 = vshll.u32 %v2081, 16
        %v2132 = vrot.slane %v2130, 5
        %v2133 = vsel %vm898, %v2128, %v2132
        %v2135 = vshrl.u32 %v2082, 16
        %v2137 = vrot.slane %v2135, 4
        %v2138 = vshll.u32 %v2082, 16
        %v2140 = vrot.slane %v2138, 5
        %v2141 = vor.u32 %v2137, %v2140
        %v2142 = vrot.slane %v2141, 4
        %v2144 = vshll.u32 %v2083, 16
        %v2146 = vrot.slane %v2144, 5
        %v2147 = vsel %vm898, %v2142, %v2146
        %v2149 = vshrl.u32 %v2084, 16
        %v2151 = vrot.slane %v2149, 4
        %v2152 = vshll.u32 %v2084, 16
        %v2154 = vrot.slane %v2152, 5
        %v2155 = vor.u32 %v2151, %v2154
        %v2156 = vrot.slane %v2155, 4
        %v2158 = vshll.u32 %v2085, 16
        %v2160 = vrot.slane %v2158, 5
        %v2161 = vsel %vm898, %v2156, %v2160
        %v2163 = vshrl.u32 %v2086, 16
        %v2165 = vrot.slane %v2163, 4
        %v2166 = vshll.u32 %v2086, 16
        %v2168 = vrot.slane %v2166, 5
        %v2169 = vor.u32 %v2165, %v2168
        %v2170 = vrot.slane %v2169, 4
        %v2172 = vshll.u32 %v2087, 16
        %v2174 = vrot.slane %v2172, 5
        %v2175 = vsel %vm898, %v2170, %v2174
        %v2177 = vshrl.u32 %v2088, 16
        %v2179 = vrot.slane %v2177, 4
        %v2180 = vshll.u32 %v2088, 16
        %v2182 = vrot.slane %v2180, 5
        %v2183 = vor.u32 %v2179, %v2182
        %v2184 = vrot.slane %v2183, 4
        %v2186 = vshll.u32 %v2089, 16
        %v2188 = vrot.slane %v2186, 5
        %v2189 = vsel %vm898, %v2184, %v2188
        %v2191 = vshrl.u32 %v2090, 16
        %v2193 = vrot.slane %v2191, 4
        %v2194 = vshll.u32 %v2090, 16
        %v2196 = vrot.slane %v2194, 5
        %v2197 = vor.u32 %v2193, %v2196
        %v2198 = vrot.slane %v2197, 4
        %v2200 = vshll.u32 %v2091, 16
        %v2202 = vrot.slane %v2200, 5
        %v2203 = vsel %vm898, %v2198, %v2202
        %s2204 = scalar_lea.vmem %s3, 32
        %v2205 = vld [vmem:[%s2204] sm:$0xf]
        %v2206 = vunpack.c.l.b16 %v2105
        %v2207 = vunpack.c.l.b16 %v2119
        %v2208 = vunpack.c.l.b16 %v2133
        %v2209 = vunpack.c.l.b16 %v2147
        %v2210 = vunpack.c.l.b16 %v2161
        %v2211 = vunpack.c.l.b16 %v2175
        %v2212 = vunpack.c.l.b16 %v2189
        %v2213 = vunpack.c.l.b16 %v2203
        %v2214 = vpack.c.b16 %v2207, %v2206
        %v2215 = vpack.c.b16 %v2209, %v2208
        %v2216 = vpack.c.b16 %v2211, %v2210
        %v2217 = vpack.c.b16 %v2213, %v2212
        %v2219 = vsel %vm1025, %v2214, 0
        %v2222 = vsel %vm1025, %v2215, 0
        %v2225 = vsel %vm1025, %v2216, 0
        %v2228 = vsel %vm1025, %v2217, 0
        %v2231 = vsel %vm1038, %v2205, 0
        %2233 = vmatpush.bf16.msra.mxu0 0
        %2234 = vmatpush.bf16.msra.mxu0 0
        %2235 = vmatpush.bf16.msra.mxu0 0
        %2236 = vmatpush.bf16.msra.mxu0 0
        %2237 = vmatpush.bf16.msra.mxu0 0
        %2238 = vmatpush.bf16.msra.mxu0 0
        %2239 = vmatpush.bf16.msra.mxu0 0
        %2240 = vmatpush.bf16.msra.mxu0 %v2231
        %2241 = vmatmul.bf16.gmra.mxu0 %v2219
        %v2242 = vpop.f32.mrf.mxu0
        %v2243 = vadd.f32 0.0, %v2242
        %v2244 = vpop.f32.mrf.mxu0
        %v2245 = vadd.f32 0.0, %v2244
        %2246 = vmatmul.bf16.gmra.mxu0 %v2222
        %v2247 = vpop.f32.mrf.mxu0
        %v2248 = vadd.f32 0.0, %v2247
        %v2249 = vpop.f32.mrf.mxu0
        %v2250 = vadd.f32 0.0, %v2249
        %2251 = vmatmul.bf16.gmra.mxu0 %v2225
        %v2252 = vpop.f32.mrf.mxu0
        %v2253 = vadd.f32 0.0, %v2252
        %v2254 = vpop.f32.mrf.mxu0
        %v2255 = vadd.f32 0.0, %v2254
        %2256 = vmatmul.bf16.gmra.mxu0 %v2228
        %v2257 = vpop.f32.mrf.mxu0
        %v2258 = vadd.f32 0.0, %v2257
        %v2259 = vpop.f32.mrf.mxu0
        %v2260 = vadd.f32 0.0, %v2259
        %2261 = vdwg.mxu0
        %v2262 = vadd.f32 %v2068, %v2243
        %v2263 = vadd.f32 %v2069, %v2245
        %v2264 = vadd.f32 %v2070, %v2248
        %v2265 = vadd.f32 %v2071, %v2250
        %v2266 = vadd.f32 %v2072, %v2253
        %v2267 = vadd.f32 %v2073, %v2255
        %v2268 = vadd.f32 %v2074, %v2258
        %v2269 = vadd.f32 %v2075, %v2260
        %v2271 = vperm.slane %v308, 0
        %v2273 = vadd.f32 %v2262, %v2271
        %v2274 = vadd.f32 %v2263, %v2271
        %v2275 = vadd.f32 %v2264, %v2271
        %v2276 = vadd.f32 %v2265, %v2271
        %v2277 = vadd.f32 %v2266, %v2271
        %v2278 = vadd.f32 %v2267, %v2271
        %v2279 = vadd.f32 %v2268, %v2271
        %v2280 = vadd.f32 %v2269, %v2271
        %v2281 = vmax.f32 %v2273, 0.0
        %v2282 = vmax.f32 %v2274, 0.0
        %v2283 = vmax.f32 %v2275, 0.0
        %v2284 = vmax.f32 %v2276, 0.0
        %v2285 = vmax.f32 %v2277, 0.0
        %v2286 = vmax.f32 %v2278, 0.0
        %v2287 = vmax.f32 %v2279, 0.0
        %v2288 = vmax.f32 %v2280, 0.0
        %v2289 = vpack.c.bf16 %v2282, %v2281
        %v2290 = vpack.c.bf16 %v2284, %v2283
        %v2291 = vpack.c.bf16 %v2286, %v2285
        %v2292 = vpack.c.bf16 %v2288, %v2287
        %v2293 = vld [vmem:[%s303] sm:$0xf]
        %v2294 = vld [vmem:[%s303 + $0x4] sm:$0xf]
        %v2295 = vld [vmem:[%s303 + $0x8] sm:$0xf]
        %v2296 = vld [vmem:[%s303 + $0xc] sm:$0xf]
        %v2297 = vld [vmem:[%s303 + $0x10] sm:$0xf]
        %v2298 = vld [vmem:[%s303 + $0x14] sm:$0xf]
        %v2299 = vld [vmem:[%s303 + $0x18] sm:$0xf]
        %v2300 = vld [vmem:[%s303 + $0x1c] sm:$0xf]
        %v2301 = vld [vmem:[%s303 + $0x20] sm:$0xf]
        %v2302 = vld [vmem:[%s303 + $0x24] sm:$0xf]
        %v2303 = vld [vmem:[%s303 + $0x28] sm:$0xf]
        %v2304 = vld [vmem:[%s303 + $0x2c] sm:$0xf]
        %v2305 = vld [vmem:[%s303 + $0x30] sm:$0xf]
        %v2306 = vld [vmem:[%s303 + $0x34] sm:$0xf]
        %v2307 = vld [vmem:[%s303 + $0x38] sm:$0xf]
        %v2308 = vld [vmem:[%s303 + $0x3c] sm:$0xf]
        %s2309 = scalar_lea.vmem %s303, 64
        %v2310 = vld [vmem:[%s2309] sm:$0xf]
        %v2311 = vld [vmem:[%s2309 + $0x4] sm:$0xf]
        %v2312 = vld [vmem:[%s2309 + $0x8] sm:$0xf]
        %v2313 = vld [vmem:[%s2309 + $0xc] sm:$0xf]
        %v2314 = vld [vmem:[%s2309 + $0x10] sm:$0xf]
        %v2315 = vld [vmem:[%s2309 + $0x14] sm:$0xf]
        %v2316 = vld [vmem:[%s2309 + $0x18] sm:$0xf]
        %v2317 = vld [vmem:[%s2309 + $0x1c] sm:$0xf]
        %v2318 = vld [vmem:[%s2309 + $0x20] sm:$0xf]
        %v2319 = vld [vmem:[%s2309 + $0x24] sm:$0xf]
        %v2320 = vld [vmem:[%s2309 + $0x28] sm:$0xf]
        %v2321 = vld [vmem:[%s2309 + $0x2c] sm:$0xf]
        %v2322 = vld [vmem:[%s2309 + $0x30] sm:$0xf]
        %v2323 = vld [vmem:[%s2309 + $0x34] sm:$0xf]
        %v2324 = vld [vmem:[%s2309 + $0x38] sm:$0xf]
        %v2325 = vld [vmem:[%s2309 + $0x3c] sm:$0xf]
        %v2326 = vunpack.c.l.bf16 %v2293
        %v2327 = vunpack.c.l.bf16 %v2295
        %v2328 = vunpack.c.l.bf16 %v2297
        %v2329 = vunpack.c.l.bf16 %v2299
        %v2330 = vunpack.c.l.bf16 %v2301
        %v2331 = vunpack.c.l.bf16 %v2303
        %v2332 = vunpack.c.l.bf16 %v2305
        %v2333 = vunpack.c.l.bf16 %v2307
        %v2334 = vunpack.c.l.bf16 %v2294
        %v2335 = vunpack.c.l.bf16 %v2296
        %v2336 = vunpack.c.l.bf16 %v2298
        %v2337 = vunpack.c.l.bf16 %v2300
        %v2338 = vunpack.c.l.bf16 %v2302
        %v2339 = vunpack.c.l.bf16 %v2304
        %v2340 = vunpack.c.l.bf16 %v2306
        %v2341 = vunpack.c.l.bf16 %v2308
        %v2342 = vadd.f32 %v2326, %v2334
        %v2343 = vadd.f32 %v2327, %v2335
        %v2344 = vadd.f32 %v2328, %v2336
        %v2345 = vadd.f32 %v2329, %v2337
        %v2346 = vadd.f32 %v2330, %v2338
        %v2347 = vadd.f32 %v2331, %v2339
        %v2348 = vadd.f32 %v2332, %v2340
        %v2349 = vadd.f32 %v2333, %v2341
        %v2350 = vunpack.c.l.bf16 %v2310
        %v2351 = vunpack.c.l.bf16 %v2312
        %v2352 = vunpack.c.l.bf16 %v2314
        %v2353 = vunpack.c.l.bf16 %v2316
        %v2354 = vunpack.c.l.bf16 %v2318
        %v2355 = vunpack.c.l.bf16 %v2320
        %v2356 = vunpack.c.l.bf16 %v2322
        %v2357 = vunpack.c.l.bf16 %v2324
        %v2358 = vadd.f32 %v2342, %v2350
        %v2359 = vadd.f32 %v2343, %v2351
        %v2360 = vadd.f32 %v2344, %v2352
        %v2361 = vadd.f32 %v2345, %v2353
        %v2362 = vadd.f32 %v2346, %v2354
        %v2363 = vadd.f32 %v2347, %v2355
        %v2364 = vadd.f32 %v2348, %v2356
        %v2365 = vadd.f32 %v2349, %v2357
        %v2366 = vunpack.c.l.bf16 %v2311
        %v2367 = vunpack.c.l.bf16 %v2313
        %v2368 = vunpack.c.l.bf16 %v2315
        %v2369 = vunpack.c.l.bf16 %v2317
        %v2370 = vunpack.c.l.bf16 %v2319
        %v2371 = vunpack.c.l.bf16 %v2321
        %v2372 = vunpack.c.l.bf16 %v2323
        %v2373 = vunpack.c.l.bf16 %v2325
        %v2374 = vadd.f32 %v2358, %v2366
        %v2375 = vadd.f32 %v2359, %v2367
        %v2376 = vadd.f32 %v2360, %v2368
        %v2377 = vadd.f32 %v2361, %v2369
        %v2378 = vadd.f32 %v2362, %v2370
        %v2379 = vadd.f32 %v2363, %v2371
        %v2380 = vadd.f32 %v2364, %v2372
        %v2381 = vadd.f32 %v2365, %v2373
        %v2382 = vmul.f32 %v2374, 0.25
        %v2383 = vmul.f32 %v2375, 0.25
        %v2384 = vmul.f32 %v2376, 0.25
        %v2385 = vmul.f32 %v2377, 0.25
        %v2386 = vmul.f32 %v2378, 0.25
        %v2387 = vmul.f32 %v2379, 0.25
        %v2388 = vmul.f32 %v2380, 0.25
        %v2389 = vmul.f32 %v2381, 0.25
        %v2390 = vpack.c.bf16 %v2383, %v2382
        %v2391 = vpack.c.bf16 %v2385, %v2384
        %v2392 = vpack.c.bf16 %v2387, %v2386
        %v2393 = vpack.c.bf16 %v2389, %v2388
        %v2396 = vunpack.c.l.b16 %v311
        %v2397 = vunpack.c.l.b16 %v312
        %v2398 = vpack.c.b16 %v2397, %v2396
        %v2401 = vsel %vm443, %v2390, 0
        %v2404 = vsel %vm443, %v2391, 0
        %v2407 = vsel %vm443, %v2392, 0
        %v2410 = vsel %vm443, %v2393, 0
        %2412 = vmatpush.bf16.msra.mxu0 0
        %2413 = vmatpush.bf16.msra.mxu0 0
        %2414 = vmatpush.bf16.msra.mxu0 0
        %2415 = vmatpush.bf16.msra.mxu0 0
        %2416 = vmatpush.bf16.msra.mxu0 0
        %2417 = vmatpush.bf16.msra.mxu0 0
        %2418 = vmatpush.bf16.msra.mxu0 0
        %2419 = vmatpush.bf16.msra.mxu0 %v2398
        %2420 = vmatmul.bf16.gmra.mxu0 %v2401
        %v2421 = vpop.f32.mrf.mxu0
        %v2422 = vadd.f32 0.0, %v2421
        %v2423 = vpop.f32.mrf.mxu0
        %v2424 = vadd.f32 0.0, %v2423
        %2425 = vmatmul.bf16.gmra.mxu0 %v2404
        %v2426 = vpop.f32.mrf.mxu0
        %v2427 = vadd.f32 0.0, %v2426
        %v2428 = vpop.f32.mrf.mxu0
        %v2429 = vadd.f32 0.0, %v2428
        %2430 = vmatmul.bf16.gmra.mxu0 %v2407
        %v2431 = vpop.f32.mrf.mxu0
        %v2432 = vadd.f32 0.0, %v2431
        %v2433 = vpop.f32.mrf.mxu0
        %v2434 = vadd.f32 0.0, %v2433
        %2435 = vmatmul.bf16.gmra.mxu0 %v2410
        %v2436 = vpop.f32.mrf.mxu0
        %v2437 = vadd.f32 0.0, %v2436
        %v2438 = vpop.f32.mrf.mxu0
        %v2439 = vadd.f32 0.0, %v2438
        %2440 = vdwg.mxu0
        %v2442 = vsel %vm1025, %v2289, 0
        %v2445 = vsel %vm1025, %v2290, 0
        %v2448 = vsel %vm1025, %v2291, 0
        %v2451 = vsel %vm1025, %v2292, 0
        %v2454 = vsel %vm1038, %v309, 0
        %2456 = vmatpush.bf16.msra.mxu0 0
        %2457 = vmatpush.bf16.msra.mxu0 0
        %2458 = vmatpush.bf16.msra.mxu0 0
        %2459 = vmatpush.bf16.msra.mxu0 0
        %2460 = vmatpush.bf16.msra.mxu0 0
        %2461 = vmatpush.bf16.msra.mxu0 0
        %2462 = vmatpush.bf16.msra.mxu0 0
        %2463 = vmatpush.bf16.msra.mxu0 %v2454
        %2464 = vmatmul.bf16.gmra.mxu0 %v2442
        %v2465 = vpop.f32.mrf.mxu0
        %v2466 = vadd.f32 %v2422, %v2465
        %v2467 = vpop.f32.mrf.mxu0
        %v2468 = vadd.f32 %v2424, %v2467
        %2469 = vmatmul.bf16.gmra.mxu0 %v2445
        %v2470 = vpop.f32.mrf.mxu0
        %v2471 = vadd.f32 %v2427, %v2470
        %v2472 = vpop.f32.mrf.mxu0
        %v2473 = vadd.f32 %v2429, %v2472
        %2474 = vmatmul.bf16.gmra.mxu0 %v2448
        %v2475 = vpop.f32.mrf.mxu0
        %v2476 = vadd.f32 %v2432, %v2475
        %v2477 = vpop.f32.mrf.mxu0
        %v2478 = vadd.f32 %v2434, %v2477
        %2479 = vmatmul.bf16.gmra.mxu0 %v2451
        %v2480 = vpop.f32.mrf.mxu0
        %v2481 = vadd.f32 %v2437, %v2480
        %v2482 = vpop.f32.mrf.mxu0
        %v2483 = vadd.f32 %v2439, %v2482
        %2484 = vdwg.mxu0
        %v2486 = vperm.slane %v310, 0
        %v2488 = vadd.f32 %v2466, %v2486
        %v2489 = vadd.f32 %v2468, %v2486
        %v2490 = vadd.f32 %v2471, %v2486
        %v2491 = vadd.f32 %v2473, %v2486
        %v2492 = vadd.f32 %v2476, %v2486
        %v2493 = vadd.f32 %v2478, %v2486
        %v2494 = vadd.f32 %v2481, %v2486
        %v2495 = vadd.f32 %v2483, %v2486
        %v2496 = vmax.f32 %v2488, 0.0
        %v2497 = vmax.f32 %v2489, 0.0
        %v2498 = vmax.f32 %v2490, 0.0
        %v2499 = vmax.f32 %v2491, 0.0
        %v2500 = vmax.f32 %v2492, 0.0
        %v2501 = vmax.f32 %v2493, 0.0
        %v2502 = vmax.f32 %v2494, 0.0
        %v2503 = vmax.f32 %v2495, 0.0
        %vm2504 = vcmask 261120
        %2505 = vst.msk [vmem:[%s298] sm:$0xff] %vm2504, %v2496
        %2506 = vst.msk [vmem:[%s298 + $0x8] sm:$0xff] %vm2504, %v2497
        %2507 = vst.msk [vmem:[%s298 + $0x10] sm:$0xff] %vm2504, %v2498
        %2508 = vst.msk [vmem:[%s298 + $0x18] sm:$0xff] %vm2504, %v2499
        %2509 = vst.msk [vmem:[%s298 + $0x20] sm:$0xff] %vm2504, %v2500
        %2510 = vst.msk [vmem:[%s298 + $0x28] sm:$0xff] %vm2504, %v2501
        %2511 = vst.msk [vmem:[%s298 + $0x30] sm:$0xff] %vm2504, %v2502
        %2512 = vst.msk [vmem:[%s298 + $0x38] sm:$0xff] %vm2504, %v2503
        %s2513 = sand.u32 %s203, 1
        %s2514 = scalar_lea.sflag [#allocation4], %s2513
        %s2515 = sand.u32 %s203, 1
        %s2516 = smul.addr %s2515, 64
        %s2517 = scalar_lea.vmem [#allocation3], %s2516
        // Predicated region
        $region53: #{resnext_block_forward.1} parent=51 // pred_check
          %p2518 = pneg %p213
        $region54: #{resnext_block_forward.1} parent=51 // pred_check_branch
          %2520 = sbr.rel (%p2518) target = $region56
        $region55: #{resnext_block_forward.1} parent=51 // pred_region
          %2522 = vsyncadd %s2514, 0
          %s2523 = smul.addr %s22, 8
          %s2524 = smul.addr %s2523, 8
          %s2525 = scalar_lea.hbm %s8, %s2524
          %s2526 = sshll.u32 %s2517, 4
          %s2527 = int_to_ptr.vmem [resolvable:$true] %s2526
          %s2528 = sshll.u32 %s2525, 4
          %s2529 = int_to_ptr.hbm [resolvable:$true] %s2528
          %2534 = dma.vmem_to_hbm [thread:$0]  %s2527, 1024, %s2529, %s2514, 128, 128, 8
        $region56: #{resnext_block_forward.1} parent=51 // pred_fallthru
          _
      $region52: #{resnext_block_forward.1} parent=5 // pred_fallthru
        _
      %p2535 = scmp.le.s32.totalorder 2, %s17
      // Predicated region
      $region57: #{resnext_block_forward.1} parent=5 // pred_check
        %p2536 = pneg %p2535
      $region58: #{resnext_block_forward.1} parent=5 // pred_check_branch
        %2538 = sbr.rel (%p2536) target = $region60
      $region59: #{resnext_block_forward.1} parent=5 // pred_region
        %s2539 = ssub.s32 %s17, 2
        // Predicated region
        $region61: #{resnext_block_forward.1} parent=59 // pred_check
          %p2540 = pneg %p219
        $region62: #{resnext_block_forward.1} parent=59 // pred_check_branch
          %2542 = sbr.rel (%p2540) target = $region64
        $region63: #{resnext_block_forward.1} parent=59 // pred_region
          %s2543 = sand.u32 %s204, 1
          %s2544 = scalar_lea.sflag [#allocation4], %s2543
          %s2545 = sand.u32 %s204, 1
          %s2546 = smul.addr %s2545, 64
          %s2547 = scalar_lea.vmem [#allocation3], %s2546
          %2549 = dma.done %s2544, 1024
        $region64: #{resnext_block_forward.1} parent=59 // pred_fallthru
          _
      $region60: #{resnext_block_forward.1} parent=5 // pred_fallthru
        _
    $region6: #{resnext_block_forward.1} parent=1 // loop_footer
      %s21 = sadd.s32 1, %s17
    $region7: #{resnext_block_forward.1} parent=1 // loop_footer_branch
      %16 = sbr.rel target = $region3
    $region8: #{resnext_block_forward.1} parent=1 // loop_exit
      _
    %2550 = vsyncpa [#allocation4], 1
    %s2551 = scalar_lea.sflag [#allocation4], 1
    %2552 = vsyncpa %s2551, 1

</llo_original>
